<compile_context>
chip_gen: v7x
topology: tpu7x:2x2x1
jax: 0.10.0
libtpu: 0.0.40
codegen_flags: <defaults>
</compile_context>

<pallas_src>
import jax
import jax.numpy as jnp
from jax.experimental import pallas as pl
from jax.experimental.pallas import tpu as pltpu

INPUT_DIM = 784
HIDDEN = 300
LATENT = 20
LATENT_PAD = 128           # lane-aligned slot width for mu / logvar in the fused head
HEAD_W = 2 * LATENT_PAD    # 256 output columns for the fused layer2||layer3 matmul
TB_MAX = 1024              # batch tile; ~15 MiB of pipelined VMEM at bf16 recon


def _round_up(n, m):
    return ((n + m - 1) // m) * m


def _choose_tiling(B):
    """Pick (TB, Bp) = (batch tile, padded batch).

    Goals: TB as large as possible (MXU-fed on v5e, amortized step overhead),
    >= 2 grid steps when feasible (v7x dual TC), and no padding pass when a
    divisor tile exists for large B.
    """
    if B <= TB_MAX:
        Bp = _round_up(B, 16)
        if Bp >= 32:
            TB = _round_up(Bp // 2, 16)   # at least 2 tiles -> both v7x TCs busy
            Bp = _round_up(Bp, TB)
        else:
            TB = Bp                       # tiny batch: single tile
        return TB, Bp
    # Large batch: prefer the largest 16-aligned tile <= TB_MAX that divides B
    # exactly (no jnp.pad / output slice HBM passes).
    for TB in range(TB_MAX, 127, -16):
        if B % TB == 0:
            return TB, B
    return TB_MAX, _round_up(B, TB_MAX)


def _vae_kernel(x_ref, w1_ref, b1_ref, w23_ref, b23_ref, w4_ref, b4_ref,
                w5_ref, b5_ref, eps_ref, recon_ref, mulogvar_ref):
    # ---- encoder: layer1 + relu (bf16 operands, f32 accumulation) ----
    x_bf = x_ref[...].astype(jnp.bfloat16)          # cast in-register, not in HBM
    h = jnp.dot(x_bf, w1_ref[...],
                preferred_element_type=jnp.float32) + b1_ref[...]
    h = jnp.maximum(h, 0.0)

    # ---- fused, lane-aligned layer2 || layer3 head: one (300, 256) f32 matmul ----
    # (tiny: ~2% of FLOPs, kept in f32 since it feeds exp(0.5*logvar))
    ml = jnp.dot(h, w23_ref[...],
                 preferred_element_type=jnp.float32) + b23_ref[...]
    mu = ml[:, :LATENT]                              # lanes 0:20   (vreg 0, offset 0)
    logvar = ml[:, LATENT_PAD:LATENT_PAD + LATENT]   # lanes 128:148 (vreg 1, offset 0)

    # ---- reparameterize: z = mu + eps * exp(0.5 * logvar) (f32 elementwise) ----
    z = mu + eps_ref[...] * jnp.exp(0.5 * logvar)

    # ---- decoder: layer4 + relu, layer5 + sigmoid ----
    h2 = jnp.dot(z.astype(jnp.bfloat16), w4_ref[...],
                 preferred_element_type=jnp.float32) + b4_ref[...]
    h2 = jnp.maximum(h2, 0.0)
    logits = jnp.dot(h2.astype(jnp.bfloat16), w5_ref[...],
                     preferred_element_type=jnp.float32) + b5_ref[...]

    # bf16 store halves the dominant HBM stream; sigmoid in [0,1] so bf16 is
    # well within tolerance.
    recon_ref[...] = jax.nn.sigmoid(logits).astype(recon_ref.dtype)
    mulogvar_ref[...] = ml


@jax.jit
def vae_forward(x_nchw, packed, eps):
    """Fused VAE forward.

    x_nchw: (B, 1, 28, 28) float32 (anything whose trailing dims flatten to 784)
    packed: dict from pack_params() (bf16 big weights, f32 lane-aligned head)
    eps:    (B, 20) float32 standard-normal reparameterization noise
    Returns (recon (B, 784) bf16, mu (B, 20) f32, logvar (B, 20) f32).
    """
    x = x_nchw.reshape(-1, INPUT_DIM).astype(jnp.float32)
    B = x.shape[0]

    TB, Bp = _choose_tiling(B)
    if Bp != B:                                   # only for small / awkward B
        x = jnp.pad(x, ((0, Bp - B), (0, 0)))
        eps = jnp.pad(eps, ((0, Bp - B), (0, 0)))

    batch_map = lambda i: (i, 0)        # per-tile blocks (pipelined, double-buffered)
    const_map = lambda i: (0, 0)        # weights resident across grid steps

    in_specs = [
        pl.BlockSpec((TB, INPUT_DIM), batch_map),        # x (f32, cast in kernel)
        pl.BlockSpec((INPUT_DIM, HIDDEN), const_map),    # w1 (bf16)
        pl.BlockSpec((1, HIDDEN), const_map),            # b1
        pl.BlockSpec((HIDDEN, HEAD_W), const_map),       # w23 (f32, lane-aligned)
        pl.BlockSpec((1, HEAD_W), const_map),            # b23
        pl.BlockSpec((LATENT, HIDDEN), const_map),       # w4 (bf16)
        pl.BlockSpec((1, HIDDEN), const_map),            # b4
        pl.BlockSpec((HIDDEN, INPUT_DIM), const_map),    # w5 (bf16)
        pl.BlockSpec((1, INPUT_DIM), const_map),         # b5
        pl.BlockSpec((TB, LATENT), batch_map),           # eps
    ]
    out_specs = (
        pl.BlockSpec((TB, INPUT_DIM), batch_map),        # recon (bf16)
        pl.BlockSpec((TB, HEAD_W), batch_map),           # mu || logvar (lane-dense)
    )

    recon_p, ml_p = pl.pallas_call(
        _vae_kernel,
        out_shape=(
            jax.ShapeDtypeStruct((Bp, INPUT_DIM), jnp.bfloat16),
            jax.ShapeDtypeStruct((Bp, HEAD_W), jnp.float32),
        ),
        grid=(Bp // TB,),
        in_specs=in_specs,
        out_specs=out_specs,
        compiler_params=pltpu.CompilerParams(
            dimension_semantics=("parallel",),   # shard batch tiles across TCs (v7x)
            vmem_limit_bytes=48 << 20,           # headroom under v7x's 64 MiB VMEM
        ),
    )(x, packed["w1"], packed["b1"], packed["w23"], packed["b23"],
      packed["w4"], packed["b4"], packed["w5"], packed["b5"], eps)

    recon = recon_p if Bp == B else recon_p[:B]
    mu = ml_p[:B, :LATENT]
    logvar = ml_p[:B, LATENT_PAD:LATENT_PAD + LATENT]
    return recon, mu, logvar


def init_params(key, input_dim=INPUT_DIM):
    """PyTorch-Linear-shaped params; weights stored pre-transposed (in, out), f32."""
    dims = [
        ("w1", "b1", input_dim, HIDDEN),
        ("w2", "b2", HIDDEN, LATENT),
        ("w3", "b3", HIDDEN, LATENT),
        ("w4", "b4", LATENT, HIDDEN),
        ("w5", "b5", HIDDEN, input_dim),
    ]
    params = {}
    for wname, bname, fan_in, fan_out in dims:
        key, kw, kb = jax.random.split(key, 3)
        bound = 1.0 / jnp.sqrt(float(fan_in))
        params[wname] = jax.random.uniform(
            kw, (fan_in, fan_out), jnp.float32, -bound, bound)
        params[bname] = jax.random.uniform(
            kb, (1, fan_out), jnp.float32, -bound, bound)
    return params


def pack_params(params):
    """Cast big weights to bf16; pack layer2/3 into a lane-aligned f32 (300, 256)
    slab: mu columns at 0:20, logvar columns at 128:148, zeros elsewhere."""
    w23 = jnp.zeros((HIDDEN, HEAD_W), jnp.float32)
    w23 = w23.at[:, :LATENT].set(params["w2"])
    w23 = w23.at[:, LATENT_PAD:LATENT_PAD + LATENT].set(params["w3"])
    b23 = jnp.zeros((1, HEAD_W), jnp.float32)
    b23 = b23.at[:, :LATENT].set(params["b2"])
    b23 = b23.at[:, LATENT_PAD:LATENT_PAD + LATENT].set(params["b3"])
    return {
        "w1": params["w1"].astype(jnp.bfloat16), "b1": params["b1"].astype(jnp.float32),
        "w23": w23,                              "b23": b23,
        "w4": params["w4"].astype(jnp.bfloat16), "b4": params["b4"].astype(jnp.float32),
        "w5": params["w5"].astype(jnp.bfloat16), "b5": params["b5"].astype(jnp.float32),
    }


def vae_reference(x_nchw, params, eps):
    """Pure-JAX f32 reference matching the PyTorch module semantics."""
    x = x_nchw.reshape(-1, INPUT_DIM).astype(jnp.float32)
    h = jax.nn.relu(x @ params["w1"] + params["b1"])
    mu = h @ params["w2"] + params["b2"]
    logvar = h @ params["w3"] + params["b3"]
    z = mu + eps * jnp.exp(0.5 * logvar)
    h2 = jax.nn.relu(z @ params["w4"] + params["b4"])
    recon = jax.nn.sigmoid(h2 @ params["w5"] + params["b5"])
    return recon, mu, logvar


if __name__ == "__main__":
    key = jax.random.PRNGKey(0)
    k_x, k_p, k_eps = jax.random.split(key, 3)

    B = 2
    x = jax.random.normal(k_x, (B, 1, 28, 28), dtype=jnp.float32)  # NCHW -> 784
    params = init_params(k_p, input_dim=INPUT_DIM)
    packed = pack_params(params)
    # TODO(synk): torch.randn_like(std) is generated outside the kernel and
    # passed in explicitly so the forward stays deterministic / testable.
    eps = jax.random.normal(k_eps, (B, LATENT), dtype=jnp.float32)

    recon, mu, logvar = vae_forward(x, packed, eps)
    jax.block_until_ready((recon, mu, logvar))

    assert recon.shape == (B, INPUT_DIM)
    assert mu.shape == (B, LATENT) and logvar.shape == (B, LATENT)
    assert bool(jnp.all(jnp.isfinite(recon.astype(jnp.float32))))

    # bf16 MXU operands / bf16 recon store -> relaxed tolerance vs f32 reference.
    r_ref, mu_r, lv_r = vae_reference(x, params, eps)
    assert bool(jnp.allclose(recon.astype(jnp.float32), r_ref, atol=5e-2, rtol=5e-2))
    assert bool(jnp.allclose(mu, mu_r, atol=5e-2, rtol=5e-2))
    assert bool(jnp.allclose(logvar, lv_r, atol=5e-2, rtol=5e-2))

    print("KERNEL_OK")
</pallas_src>

<mosaic_0001>
module attributes {stable_mosaic.version = 11 : i64} {
  func.func @_vae_kernel(%arg0: i32, %arg1: memref<16x784xf32, #tpu.memory_space<vmem>>, %arg2: memref<784x300xbf16, #tpu.memory_space<vmem>>, %arg3: memref<1x300xf32, #tpu.memory_space<vmem>>, %arg4: memref<300x256xf32, #tpu.memory_space<vmem>>, %arg5: memref<1x256xf32, #tpu.memory_space<vmem>>, %arg6: memref<20x300xbf16, #tpu.memory_space<vmem>>, %arg7: memref<1x300xf32, #tpu.memory_space<vmem>>, %arg8: memref<300x784xbf16, #tpu.memory_space<vmem>>, %arg9: memref<1x784xf32, #tpu.memory_space<vmem>>, %arg10: memref<16x20xf32, #tpu.memory_space<vmem>>, %arg11: memref<16x784xbf16, #tpu.memory_space<vmem>>, %arg12: memref<16x256xf32, #tpu.memory_space<vmem>>) attributes {dimension_semantics = [#tpu.dimension_semantics<parallel>], iteration_bounds = array<i64: 1>, scalar_prefetch = 0 : i64, scratch_operands = 0 : i64, tpu.core_type = #tpu.core_type<tc>, window_params = [{transform_indices = @transform_0, window_bounds = array<i64: 16, 784>}, {pipeline_mode = #tpu.pipeline_mode<synchronous>, transform_indices = @transform_1, window_bounds = array<i64: 784, 300>}, {pipeline_mode = #tpu.pipeline_mode<synchronous>, transform_indices = @transform_2, window_bounds = array<i64: 1, 300>}, {pipeline_mode = #tpu.pipeline_mode<synchronous>, transform_indices = @transform_3, window_bounds = array<i64: 300, 256>}, {pipeline_mode = #tpu.pipeline_mode<synchronous>, transform_indices = @transform_4, window_bounds = array<i64: 1, 256>}, {pipeline_mode = #tpu.pipeline_mode<synchronous>, transform_indices = @transform_5, window_bounds = array<i64: 20, 300>}, {pipeline_mode = #tpu.pipeline_mode<synchronous>, transform_indices = @transform_6, window_bounds = array<i64: 1, 300>}, {pipeline_mode = #tpu.pipeline_mode<synchronous>, transform_indices = @transform_7, window_bounds = array<i64: 300, 784>}, {pipeline_mode = #tpu.pipeline_mode<synchronous>, transform_indices = @transform_8, window_bounds = array<i64: 1, 784>}, {transform_indices = @transform_9, window_bounds = array<i64: 16, 20>}, {transform_indices = @transform_10, window_bounds = array<i64: 16, 784>}, {transform_indices = @transform_11, window_bounds = array<i64: 16, 256>}]} {
    %c0 = arith.constant 0 : index
    %c0_0 = arith.constant 0 : index
    %0 = vector.load %arg1[%c0, %c0_0] : memref<16x784xf32, #tpu.memory_space<vmem>>, vector<16x784xf32>
    %1 = arith.truncf %0 : vector<16x784xf32> to vector<16x784xbf16>
    %c0_1 = arith.constant 0 : index
    %c0_2 = arith.constant 0 : index
    %2 = vector.load %arg2[%c0_1, %c0_2] : memref<784x300xbf16, #tpu.memory_space<vmem>>, vector<784x300xbf16>
    %cst = arith.constant dense<0.000000e+00> : vector<16x300xf32>
    %3 = tpu.matmul %1, %2, %cst {dimension_numbers = #tpu.dot_dimension_numbers<[1], [0], [0], [1], [0, 0, 1, 1], [], []>} : vector<16x784xbf16>, vector<784x300xbf16>, vector<16x300xf32> -> vector<16x300xf32>
    %c0_3 = arith.constant 0 : index
    %c0_4 = arith.constant 0 : index
    %4 = vector.load %arg3[%c0_3, %c0_4] : memref<1x300xf32, #tpu.memory_space<vmem>>, vector<1x300xf32>
    %5 = vector.broadcast %4 : vector<1x300xf32> to vector<16x300xf32>
    %6 = arith.addf %3, %5 : vector<16x300xf32>
    %cst_5 = arith.constant 0.000000e+00 : f32
    %7 = vector.broadcast %cst_5 : f32 to vector<16x300xf32>
    %8 = arith.maximumf %6, %7 : vector<16x300xf32>
    %c0_6 = arith.constant 0 : index
    %c0_7 = arith.constant 0 : index
    %9 = vector.load %arg4[%c0_6, %c0_7] : memref<300x256xf32, #tpu.memory_space<vmem>>, vector<300x256xf32>
    %cst_8 = arith.constant dense<0.000000e+00> : vector<16x256xf32>
    %10 = tpu.matmul %8, %9, %cst_8 {dimension_numbers = #tpu.dot_dimension_numbers<[1], [0], [0], [1], [0, 0, 1, 1], [], []>} : vector<16x300xf32>, vector<300x256xf32>, vector<16x256xf32> -> vector<16x256xf32>
    %c0_9 = arith.constant 0 : index
    %c0_10 = arith.constant 0 : index
    %11 = vector.load %arg5[%c0_9, %c0_10] : memref<1x256xf32, #tpu.memory_space<vmem>>, vector<1x256xf32>
    %12 = vector.broadcast %11 : vector<1x256xf32> to vector<16x256xf32>
    %13 = arith.addf %10, %12 : vector<16x256xf32>
    %14 = vector.extract_strided_slice %13 {offsets = [0, 0], sizes = [16, 20], strides = [1, 1]} : vector<16x256xf32> to vector<16x20xf32>
    %15 = vector.extract_strided_slice %13 {offsets = [0, 128], sizes = [16, 20], strides = [1, 1]} : vector<16x256xf32> to vector<16x20xf32>
    %c0_11 = arith.constant 0 : index
    %c0_12 = arith.constant 0 : index
    %16 = vector.load %arg10[%c0_11, %c0_12] : memref<16x20xf32, #tpu.memory_space<vmem>>, vector<16x20xf32>
    %cst_13 = arith.constant 5.000000e-01 : f32
    %17 = vector.broadcast %cst_13 : f32 to vector<16x20xf32>
    %18 = arith.mulf %17, %15 : vector<16x20xf32>
    %19 = math.exp %18 : vector<16x20xf32>
    %20 = arith.mulf %16, %19 : vector<16x20xf32>
    %21 = arith.addf %14, %20 : vector<16x20xf32>
    %22 = arith.truncf %21 : vector<16x20xf32> to vector<16x20xbf16>
    %c0_14 = arith.constant 0 : index
    %c0_15 = arith.constant 0 : index
    %23 = vector.load %arg6[%c0_14, %c0_15] : memref<20x300xbf16, #tpu.memory_space<vmem>>, vector<20x300xbf16>
    %cst_16 = arith.constant dense<0.000000e+00> : vector<16x300xf32>
    %24 = tpu.matmul %22, %23, %cst_16 {dimension_numbers = #tpu.dot_dimension_numbers<[1], [0], [0], [1], [0, 0, 1, 1], [], []>} : vector<16x20xbf16>, vector<20x300xbf16>, vector<16x300xf32> -> vector<16x300xf32>
    %c0_17 = arith.constant 0 : index
    %c0_18 = arith.constant 0 : index
    %25 = vector.load %arg7[%c0_17, %c0_18] : memref<1x300xf32, #tpu.memory_space<vmem>>, vector<1x300xf32>
    %26 = vector.broadcast %25 : vector<1x300xf32> to vector<16x300xf32>
    %27 = arith.addf %24, %26 : vector<16x300xf32>
    %cst_19 = arith.constant 0.000000e+00 : f32
    %28 = vector.broadcast %cst_19 : f32 to vector<16x300xf32>
    %29 = arith.maximumf %27, %28 : vector<16x300xf32>
    %30 = arith.truncf %29 : vector<16x300xf32> to vector<16x300xbf16>
    %c0_20 = arith.constant 0 : index
    %c0_21 = arith.constant 0 : index
    %31 = vector.load %arg8[%c0_20, %c0_21] : memref<300x784xbf16, #tpu.memory_space<vmem>>, vector<300x784xbf16>
    %cst_22 = arith.constant dense<0.000000e+00> : vector<16x784xf32>
    %32 = tpu.matmul %30, %31, %cst_22 {dimension_numbers = #tpu.dot_dimension_numbers<[1], [0], [0], [1], [0, 0, 1, 1], [], []>} : vector<16x300xbf16>, vector<300x784xbf16>, vector<16x784xf32> -> vector<16x784xf32>
    %c0_23 = arith.constant 0 : index
    %c0_24 = arith.constant 0 : index
    %33 = vector.load %arg9[%c0_23, %c0_24] : memref<1x784xf32, #tpu.memory_space<vmem>>, vector<1x784xf32>
    %34 = vector.broadcast %33 : vector<1x784xf32> to vector<16x784xf32>
    %35 = arith.addf %32, %34 : vector<16x784xf32>
    %36 = arith.negf %35 : vector<16x784xf32>
    %37 = math.exp %36 : vector<16x784xf32>
    %cst_25 = arith.constant 1.000000e+00 : f32
    %38 = vector.broadcast %cst_25 : f32 to vector<16x784xf32>
    %39 = arith.addf %38, %37 : vector<16x784xf32>
    %40 = arith.divf %38, %39 : vector<16x784xf32>
    %41 = arith.truncf %40 : vector<16x784xf32> to vector<16x784xbf16>
    %c0_26 = arith.constant 0 : index
    %c0_27 = arith.constant 0 : index
    %42 = vector.load %arg11[%c0_26, %c0_27] : memref<16x784xbf16, #tpu.memory_space<vmem>>, vector<16x784xbf16>
    tpu.vector_store %arg11[%c0_26, %c0_27], %41 {strides = array<i32>} : memref<16x784xbf16, #tpu.memory_space<vmem>>, vector<16x784xbf16>,
    %c0_28 = arith.constant 0 : index
    %c0_29 = arith.constant 0 : index
    %43 = vector.load %arg12[%c0_28, %c0_29] : memref<16x256xf32, #tpu.memory_space<vmem>>, vector<16x256xf32>
    tpu.vector_store %arg12[%c0_28, %c0_29], %13 {strides = array<i32>} : memref<16x256xf32, #tpu.memory_space<vmem>>, vector<16x256xf32>,
    return
  }
  func.func @transform_0(%arg0: i32) -> (i32, i32) {
    %c0_i32 = arith.constant 0 : i32
    %c0_i32_0 = arith.constant 0 : i32
    return %arg0, %c0_i32 : i32, i32
  }
  func.func @transform_1(%arg0: i32) -> (i32, i32) {
    %c0_i32 = arith.constant 0 : i32
    %c0_i32_0 = arith.constant 0 : i32
    %c0_i32_1 = arith.constant 0 : i32
    return %c0_i32, %c0_i32_0 : i32, i32
  }
  func.func @transform_2(%arg0: i32) -> (i32, i32) {
    %c0_i32 = arith.constant 0 : i32
    %c0_i32_0 = arith.constant 0 : i32
    %c0_i32_1 = arith.constant 0 : i32
    return %c0_i32, %c0_i32_0 : i32, i32
  }
  func.func @transform_3(%arg0: i32) -> (i32, i32) {
    %c0_i32 = arith.constant 0 : i32
    %c0_i32_0 = arith.constant 0 : i32
    %c0_i32_1 = arith.constant 0 : i32
    return %c0_i32, %c0_i32_0 : i32, i32
  }
  func.func @transform_4(%arg0: i32) -> (i32, i32) {
    %c0_i32 = arith.constant 0 : i32
    %c0_i32_0 = arith.constant 0 : i32
    %c0_i32_1 = arith.constant 0 : i32
    return %c0_i32, %c0_i32_0 : i32, i32
  }
  func.func @transform_5(%arg0: i32) -> (i32, i32) {
    %c0_i32 = arith.constant 0 : i32
    %c0_i32_0 = arith.constant 0 : i32
    %c0_i32_1 = arith.constant 0 : i32
    return %c0_i32, %c0_i32_0 : i32, i32
  }
  func.func @transform_6(%arg0: i32) -> (i32, i32) {
    %c0_i32 = arith.constant 0 : i32
    %c0_i32_0 = arith.constant 0 : i32
    %c0_i32_1 = arith.constant 0 : i32
    return %c0_i32, %c0_i32_0 : i32, i32
  }
  func.func @transform_7(%arg0: i32) -> (i32, i32) {
    %c0_i32 = arith.constant 0 : i32
    %c0_i32_0 = arith.constant 0 : i32
    %c0_i32_1 = arith.constant 0 : i32
    return %c0_i32, %c0_i32_0 : i32, i32
  }
  func.func @transform_8(%arg0: i32) -> (i32, i32) {
    %c0_i32 = arith.constant 0 : i32
    %c0_i32_0 = arith.constant 0 : i32
    %c0_i32_1 = arith.constant 0 : i32
    return %c0_i32, %c0_i32_0 : i32, i32
  }
  func.func @transform_9(%arg0: i32) -> (i32, i32) {
    %c0_i32 = arith.constant 0 : i32
    %c0_i32_0 = arith.constant 0 : i32
    return %arg0, %c0_i32 : i32, i32
  }
  func.func @transform_10(%arg0: i32) -> (i32, i32) {
    %c0_i32 = arith.constant 0 : i32
    %c0_i32_0 = arith.constant 0 : i32
    return %arg0, %c0_i32 : i32, i32
  }
  func.func @transform_11(%arg0: i32) -> (i32, i32) {
    %c0_i32 = arith.constant 0 : i32
    %c0_i32_0 = arith.constant 0 : i32
    return %arg0, %c0_i32 : i32, i32
  }
}

</mosaic_0001>

<llo_original>
// kernel: vae_forward.1
$region0: #{vae_forward.1}
  #allocation0 [shape = 'u32[]', space=smem, size = 0x4, offset = 0x4, fixed_abs, tag = 'smem constant byte address 0x4 - core index']
  #allocation1 [shape = 'u32[144,128]{1,0:T(1,128)}', space=vmem, size = 0x12000, scoped, tag = 'internal scratch']
  %s0 = inlined_call_operand.vmem [shape: f32[16,784], index: 0, kind: input, shape index: {}]
  %s1 = inlined_call_operand.vmem [shape: bf16[784,300], index: 1, kind: input, shape index: {}]
  %s2 = inlined_call_operand.vmem [shape: f32[1,300], index: 2, kind: input, shape index: {}]
  %s3 = inlined_call_operand.vmem [shape: f32[300,256], index: 3, kind: input, shape index: {}]
  %s4 = inlined_call_operand.vmem [shape: f32[1,256], index: 4, kind: input, shape index: {}]
  %s5 = inlined_call_operand.vmem [shape: bf16[20,300], index: 5, kind: input, shape index: {}]
  %s6 = inlined_call_operand.vmem [shape: f32[1,300], index: 6, kind: input, shape index: {}]
  %s7 = inlined_call_operand.vmem [shape: bf16[300,784], index: 7, kind: input, shape index: {}]
  %s8 = inlined_call_operand.vmem [shape: f32[1,784], index: 8, kind: input, shape index: {}]
  %s9 = inlined_call_operand.vmem [shape: f32[16,20], index: 9, kind: input, shape index: {}]
  %s10 = inlined_call_operand.vmem [shape: bf16[16,784], index: 10, kind: output, shape index: {0}]
  %s11 = inlined_call_operand.vmem [shape: f32[16,256], index: 11, kind: output, shape index: {1}]
  %12 = xla_tuple %s10, %s11
  %s13 = sld [smem:[#allocation0]]
  $region58: #{vae_forward.1} parent=0
    _
  %s15 = ssub.s32 1, %s13
  %s16 = scalar_select 0, %s15, %s13
  // Predicated region
  $region2: #{vae_forward.1} parent=0 // pred_check
    _
  $region3: #{vae_forward.1} parent=0 // pred_check_branch
    %18 = sbr.rel (0) target = $region5
  $region4: #{vae_forward.1} parent=0 // pred_region
    _
  $region5: #{vae_forward.1} parent=0 // pred_fallthru
    _
  // Predicated region
  $region6: #{vae_forward.1} parent=0 // pred_check
    _
  $region7: #{vae_forward.1} parent=0 // pred_check_branch
    %20 = sbr.rel (0) target = $region9
  $region8: #{vae_forward.1} parent=0 // pred_region
    _
  $region9: #{vae_forward.1} parent=0 // pred_fallthru
    _
  // Predicated region
  $region10: #{vae_forward.1} parent=0 // pred_check
    _
  $region11: #{vae_forward.1} parent=0 // pred_check_branch
    %22 = sbr.rel (0) target = $region13
  $region12: #{vae_forward.1} parent=0 // pred_region
    _
  $region13: #{vae_forward.1} parent=0 // pred_fallthru
    _
  // Predicated region
  $region14: #{vae_forward.1} parent=0 // pred_check
    _
  $region15: #{vae_forward.1} parent=0 // pred_check_branch
    %24 = sbr.rel (0) target = $region17
  $region16: #{vae_forward.1} parent=0 // pred_region
    _
  $region17: #{vae_forward.1} parent=0 // pred_fallthru
    _
  // Predicated region
  $region18: #{vae_forward.1} parent=0 // pred_check
    _
  $region19: #{vae_forward.1} parent=0 // pred_check_branch
    %26 = sbr.rel (0) target = $region21
  $region20: #{vae_forward.1} parent=0 // pred_region
    _
  $region21: #{vae_forward.1} parent=0 // pred_fallthru
    _
  // Predicated region
  $region22: #{vae_forward.1} parent=0 // pred_check
    _
  $region23: #{vae_forward.1} parent=0 // pred_check_branch
    %28 = sbr.rel (0) target = $region25
  $region24: #{vae_forward.1} parent=0 // pred_region
    _
  $region25: #{vae_forward.1} parent=0 // pred_fallthru
    _
  // Predicated region
  $region26: #{vae_forward.1} parent=0 // pred_check
    _
  $region27: #{vae_forward.1} parent=0 // pred_check_branch
    %30 = sbr.rel (0) target = $region29
  $region28: #{vae_forward.1} parent=0 // pred_region
    _
  $region29: #{vae_forward.1} parent=0 // pred_fallthru
    _
  // Predicated region
  $region30: #{vae_forward.1} parent=0 // pred_check
    _
  $region31: #{vae_forward.1} parent=0 // pred_check_branch
    %32 = sbr.rel (0) target = $region33
  $region32: #{vae_forward.1} parent=0 // pred_region
    _
  $region33: #{vae_forward.1} parent=0 // pred_fallthru
    _
  // Predicated region
  $region34: #{vae_forward.1} parent=0 // pred_check
    _
  $region35: #{vae_forward.1} parent=0 // pred_check_branch
    %34 = sbr.rel (0) target = $region37
  $region36: #{vae_forward.1} parent=0 // pred_region
    _
  $region37: #{vae_forward.1} parent=0 // pred_fallthru
    _
  // Predicated region
  $region38: #{vae_forward.1} parent=0 // pred_check
    _
  $region39: #{vae_forward.1} parent=0 // pred_check_branch
    %36 = sbr.rel (0) target = $region41
  $region40: #{vae_forward.1} parent=0 // pred_region
    _
  $region41: #{vae_forward.1} parent=0 // pred_fallthru
    _
  %v38 = vld [vmem:[%s0] sm:$0xff]
  %v39 = vld [vmem:[%s0 + $0x8] sm:$0xff]
  %v40 = vld [vmem:[%s0 + $0x10] sm:$0xff]
  %v41 = vld [vmem:[%s0 + $0x18] sm:$0xff]
  %v42 = vld [vmem:[%s0 + $0x20] sm:$0xff]
  %v43 = vld [vmem:[%s0 + $0x28] sm:$0xff]
  %v44 = vld [vmem:[%s0 + $0x30] sm:$0xff]
  %v45 = vld [vmem:[%s0 + $0x38] sm:$0xff]
  %v46 = vld [vmem:[%s0 + $0x40] sm:$0xff]
  %v47 = vld [vmem:[%s0 + $0x48] sm:$0xff]
  %v48 = vld [vmem:[%s0 + $0x50] sm:$0xff]
  %v49 = vld [vmem:[%s0 + $0x58] sm:$0xff]
  %v50 = vld [vmem:[%s0 + $0x60] sm:$0xff]
  %v51 = vld [vmem:[%s0 + $0x68] sm:$0xff]
  %v52 = vpack.c.bf16 %v45, %v38
  %v53 = vpack.c.bf16 %v46, %v39
  %v54 = vpack.c.bf16 %v47, %v40
  %v55 = vpack.c.bf16 %v48, %v41
  %v56 = vpack.c.bf16 %v49, %v42
  %v57 = vpack.c.bf16 %v50, %v43
  %v58 = vpack.c.bf16 %v51, %v44
  %v59 = vld [vmem:[%s1] sm:$0xff]
  %v60 = vld [vmem:[%s1 + $0x8] sm:$0xf]
  %v61 = vld [vmem:[%s1 + $0xc] sm:$0xff]
  %v62 = vld [vmem:[%s1 + $0x14] sm:$0xf]
  %v63 = vld [vmem:[%s1 + $0x18] sm:$0xff]
  %v64 = vld [vmem:[%s1 + $0x20] sm:$0xf]
  %v65 = vld [vmem:[%s1 + $0x24] sm:$0xff]
  %v66 = vld [vmem:[%s1 + $0x2c] sm:$0xf]
  %v67 = vld [vmem:[%s1 + $0x30] sm:$0xff]
  %v68 = vld [vmem:[%s1 + $0x38] sm:$0xf]
  %v69 = vld [vmem:[%s1 + $0x3c] sm:$0xff]
  %v70 = vld [vmem:[%s1 + $0x44] sm:$0xf]
  %v71 = vld [vmem:[%s1 + $0x48] sm:$0xff]
  %v72 = vld [vmem:[%s1 + $0x50] sm:$0xf]
  %v73 = vld [vmem:[%s1 + $0x54] sm:$0xff]
  %v74 = vld [vmem:[%s1 + $0x5c] sm:$0xf]
  %v75 = vld [vmem:[%s1 + $0x60] sm:$0xff]
  %v76 = vld [vmem:[%s1 + $0x68] sm:$0xf]
  %v77 = vld [vmem:[%s1 + $0x6c] sm:$0xff]
  %v78 = vld [vmem:[%s1 + $0x74] sm:$0xf]
  %v79 = vld [vmem:[%s1 + $0x78] sm:$0xff]
  %v80 = vld [vmem:[%s1 + $0x80] sm:$0xf]
  %v81 = vld [vmem:[%s1 + $0x84] sm:$0xff]
  %v82 = vld [vmem:[%s1 + $0x8c] sm:$0xf]
  %v83 = vld [vmem:[%s1 + $0x90] sm:$0xff]
  %v84 = vld [vmem:[%s1 + $0x98] sm:$0xf]
  %v85 = vld [vmem:[%s1 + $0x9c] sm:$0xff]
  %v86 = vld [vmem:[%s1 + $0xa4] sm:$0xf]
  %v87 = vld [vmem:[%s1 + $0xa8] sm:$0xff]
  %v88 = vld [vmem:[%s1 + $0xb0] sm:$0xf]
  %v89 = vld [vmem:[%s1 + $0xb4] sm:$0xff]
  %v90 = vld [vmem:[%s1 + $0xbc] sm:$0xf]
  %v91 = vld [vmem:[%s1 + $0xc0] sm:$0xff]
  %v92 = vld [vmem:[%s1 + $0xc8] sm:$0xf]
  %v93 = vld [vmem:[%s1 + $0xcc] sm:$0xff]
  %v94 = vld [vmem:[%s1 + $0xd4] sm:$0xf]
  %v95 = vld [vmem:[%s1 + $0xd8] sm:$0xff]
  %v96 = vld [vmem:[%s1 + $0xe0] sm:$0xf]
  %v97 = vld [vmem:[%s1 + $0xe4] sm:$0xff]
  %v98 = vld [vmem:[%s1 + $0xec] sm:$0xf]
  %v99 = vld [vmem:[%s1 + $0xf0] sm:$0xff]
  %v100 = vld [vmem:[%s1 + $0xf8] sm:$0xf]
  %v101 = vld [vmem:[%s1 + $0xfc] sm:$0xff]
  %v102 = vld [vmem:[%s1 + $0x104] sm:$0xf]
  %v103 = vld [vmem:[%s1 + $0x108] sm:$0xff]
  %v104 = vld [vmem:[%s1 + $0x110] sm:$0xf]
  %v105 = vld [vmem:[%s1 + $0x114] sm:$0xff]
  %v106 = vld [vmem:[%s1 + $0x11c] sm:$0xf]
  %v107 = vld [vmem:[%s1 + $0x120] sm:$0xff]
  %v108 = vld [vmem:[%s1 + $0x128] sm:$0xf]
  %v109 = vld [vmem:[%s1 + $0x12c] sm:$0xff]
  %v110 = vld [vmem:[%s1 + $0x134] sm:$0xf]
  %v111 = vld [vmem:[%s1 + $0x138] sm:$0xff]
  %v112 = vld [vmem:[%s1 + $0x140] sm:$0xf]
  %v113 = vld [vmem:[%s1 + $0x144] sm:$0xff]
  %v114 = vld [vmem:[%s1 + $0x14c] sm:$0xf]
  %v115 = vld [vmem:[%s1 + $0x150] sm:$0xff]
  %v116 = vld [vmem:[%s1 + $0x158] sm:$0xf]
  %v117 = vld [vmem:[%s1 + $0x15c] sm:$0xff]
  %v118 = vld [vmem:[%s1 + $0x164] sm:$0xf]
  %v119 = vld [vmem:[%s1 + $0x168] sm:$0xff]
  %v120 = vld [vmem:[%s1 + $0x170] sm:$0xf]
  %v121 = vld [vmem:[%s1 + $0x174] sm:$0xff]
  %v122 = vld [vmem:[%s1 + $0x17c] sm:$0xf]
  %v123 = vld [vmem:[%s1 + $0x180] sm:$0xff]
  %v124 = vld [vmem:[%s1 + $0x188] sm:$0xf]
  %v125 = vld [vmem:[%s1 + $0x18c] sm:$0xff]
  %v126 = vld [vmem:[%s1 + $0x194] sm:$0xf]
  %v127 = vld [vmem:[%s1 + $0x198] sm:$0xff]
  %v128 = vld [vmem:[%s1 + $0x1a0] sm:$0xf]
  %v129 = vld [vmem:[%s1 + $0x1a4] sm:$0xff]
  %v130 = vld [vmem:[%s1 + $0x1ac] sm:$0xf]
  %v131 = vld [vmem:[%s1 + $0x1b0] sm:$0xff]
  %v132 = vld [vmem:[%s1 + $0x1b8] sm:$0xf]
  %v133 = vld [vmem:[%s1 + $0x1bc] sm:$0xff]
  %v134 = vld [vmem:[%s1 + $0x1c4] sm:$0xf]
  %v135 = vld [vmem:[%s1 + $0x1c8] sm:$0xff]
  %v136 = vld [vmem:[%s1 + $0x1d0] sm:$0xf]
  %v137 = vld [vmem:[%s1 + $0x1d4] sm:$0xff]
  %v138 = vld [vmem:[%s1 + $0x1dc] sm:$0xf]
  %v139 = vld [vmem:[%s1 + $0x1e0] sm:$0xff]
  %v140 = vld [vmem:[%s1 + $0x1e8] sm:$0xf]
  %v141 = vld [vmem:[%s1 + $0x1ec] sm:$0xff]
  %v142 = vld [vmem:[%s1 + $0x1f4] sm:$0xf]
  %v143 = vld [vmem:[%s1 + $0x1f8] sm:$0xff]
  %v144 = vld [vmem:[%s1 + $0x200] sm:$0xf]
  %v145 = vld [vmem:[%s1 + $0x204] sm:$0xff]
  %v146 = vld [vmem:[%s1 + $0x20c] sm:$0xf]
  %v147 = vld [vmem:[%s1 + $0x210] sm:$0xff]
  %v148 = vld [vmem:[%s1 + $0x218] sm:$0xf]
  %v149 = vld [vmem:[%s1 + $0x21c] sm:$0xff]
  %v150 = vld [vmem:[%s1 + $0x224] sm:$0xf]
  %v151 = vld [vmem:[%s1 + $0x228] sm:$0xff]
  %v152 = vld [vmem:[%s1 + $0x230] sm:$0xf]
  %v153 = vld [vmem:[%s1 + $0x234] sm:$0xff]
  %v154 = vld [vmem:[%s1 + $0x23c] sm:$0xf]
  %v155 = vld [vmem:[%s1 + $0x240] sm:$0xff]
  %v156 = vld [vmem:[%s1 + $0x248] sm:$0xf]
  %v157 = vld [vmem:[%s1 + $0x24c] sm:$0xff]
  %v158 = vld [vmem:[%s1 + $0x254] sm:$0xf]
  %v159 = vld [vmem:[%s1 + $0x258] sm:$0xff]
  %v160 = vld [vmem:[%s1 + $0x260] sm:$0xf]
  %v161 = vld [vmem:[%s1 + $0x264] sm:$0xff]
  %v162 = vld [vmem:[%s1 + $0x26c] sm:$0xf]
  %v163 = vld [vmem:[%s1 + $0x270] sm:$0xff]
  %v164 = vld [vmem:[%s1 + $0x278] sm:$0xf]
  %v165 = vld [vmem:[%s1 + $0x27c] sm:$0xff]
  %v166 = vld [vmem:[%s1 + $0x284] sm:$0xf]
  %v167 = vld [vmem:[%s1 + $0x288] sm:$0xff]
  %v168 = vld [vmem:[%s1 + $0x290] sm:$0xf]
  %v169 = vld [vmem:[%s1 + $0x294] sm:$0xff]
  %v170 = vld [vmem:[%s1 + $0x29c] sm:$0xf]
  %v171 = vld [vmem:[%s1 + $0x2a0] sm:$0xff]
  %v172 = vld [vmem:[%s1 + $0x2a8] sm:$0xf]
  %v173 = vld [vmem:[%s1 + $0x2ac] sm:$0xff]
  %v174 = vld [vmem:[%s1 + $0x2b4] sm:$0xf]
  %v175 = vld [vmem:[%s1 + $0x2b8] sm:$0xff]
  %v176 = vld [vmem:[%s1 + $0x2c0] sm:$0xf]
  %v177 = vld [vmem:[%s1 + $0x2c4] sm:$0xff]
  %v178 = vld [vmem:[%s1 + $0x2cc] sm:$0xf]
  %v179 = vld [vmem:[%s1 + $0x2d0] sm:$0xff]
  %v180 = vld [vmem:[%s1 + $0x2d8] sm:$0xf]
  %v181 = vld [vmem:[%s1 + $0x2dc] sm:$0xff]
  %v182 = vld [vmem:[%s1 + $0x2e4] sm:$0xf]
  %v183 = vld [vmem:[%s1 + $0x2e8] sm:$0xff]
  %v184 = vld [vmem:[%s1 + $0x2f0] sm:$0xf]
  %v185 = vld [vmem:[%s1 + $0x2f4] sm:$0xff]
  %v186 = vld [vmem:[%s1 + $0x2fc] sm:$0xf]
  %v187 = vld [vmem:[%s1 + $0x300] sm:$0xff]
  %v188 = vld [vmem:[%s1 + $0x308] sm:$0xf]
  %v189 = vld [vmem:[%s1 + $0x30c] sm:$0xff]
  %v190 = vld [vmem:[%s1 + $0x314] sm:$0xf]
  %v191 = vld [vmem:[%s1 + $0x318] sm:$0xff]
  %v192 = vld [vmem:[%s1 + $0x320] sm:$0xf]
  %v193 = vld [vmem:[%s1 + $0x324] sm:$0xff]
  %v194 = vld [vmem:[%s1 + $0x32c] sm:$0xf]
  %v195 = vld [vmem:[%s1 + $0x330] sm:$0xff]
  %v196 = vld [vmem:[%s1 + $0x338] sm:$0xf]
  %v197 = vld [vmem:[%s1 + $0x33c] sm:$0xff]
  %v198 = vld [vmem:[%s1 + $0x344] sm:$0xf]
  %v199 = vld [vmem:[%s1 + $0x348] sm:$0xff]
  %v200 = vld [vmem:[%s1 + $0x350] sm:$0xf]
  %v201 = vld [vmem:[%s1 + $0x354] sm:$0xff]
  %v202 = vld [vmem:[%s1 + $0x35c] sm:$0xf]
  %v203 = vld [vmem:[%s1 + $0x360] sm:$0xff]
  %v204 = vld [vmem:[%s1 + $0x368] sm:$0xf]
  %v205 = vld [vmem:[%s1 + $0x36c] sm:$0xff]
  %v206 = vld [vmem:[%s1 + $0x374] sm:$0xf]
  %v207 = vld [vmem:[%s1 + $0x378] sm:$0xff]
  %v208 = vld [vmem:[%s1 + $0x380] sm:$0xf]
  %v209 = vld [vmem:[%s1 + $0x384] sm:$0xff]
  %v210 = vld [vmem:[%s1 + $0x38c] sm:$0xf]
  %v211 = vld [vmem:[%s1 + $0x390] sm:$0xff]
  %v212 = vld [vmem:[%s1 + $0x398] sm:$0xf]
  %v213 = vld [vmem:[%s1 + $0x39c] sm:$0xff]
  %v214 = vld [vmem:[%s1 + $0x3a4] sm:$0xf]
  %v215 = vld [vmem:[%s1 + $0x3a8] sm:$0xff]
  %v216 = vld [vmem:[%s1 + $0x3b0] sm:$0xf]
  %v217 = vld [vmem:[%s1 + $0x3b4] sm:$0xff]
  %v218 = vld [vmem:[%s1 + $0x3bc] sm:$0xf]
  %v219 = vld [vmem:[%s1 + $0x3c0] sm:$0xff]
  %v220 = vld [vmem:[%s1 + $0x3c8] sm:$0xf]
  %v221 = vld [vmem:[%s1 + $0x3cc] sm:$0xff]
  %v222 = vld [vmem:[%s1 + $0x3d4] sm:$0xf]
  %v223 = vld [vmem:[%s1 + $0x3d8] sm:$0xff]
  %v224 = vld [vmem:[%s1 + $0x3e0] sm:$0xf]
  %v225 = vld [vmem:[%s1 + $0x3e4] sm:$0xff]
  %v226 = vld [vmem:[%s1 + $0x3ec] sm:$0xf]
  %v227 = vld [vmem:[%s1 + $0x3f0] sm:$0xff]
  %v228 = vld [vmem:[%s1 + $0x3f8] sm:$0xf]
  %v229 = vld [vmem:[%s1 + $0x3fc] sm:$0xff]
  %v230 = vld [vmem:[%s1 + $0x404] sm:$0xf]
  %v231 = vld [vmem:[%s1 + $0x408] sm:$0xff]
  %v232 = vld [vmem:[%s1 + $0x410] sm:$0xf]
  %v233 = vld [vmem:[%s1 + $0x414] sm:$0xff]
  %v234 = vld [vmem:[%s1 + $0x41c] sm:$0xf]
  %v235 = vld [vmem:[%s1 + $0x420] sm:$0xff]
  %v236 = vld [vmem:[%s1 + $0x428] sm:$0xf]
  %v237 = vld [vmem:[%s1 + $0x42c] sm:$0xff]
  %v238 = vld [vmem:[%s1 + $0x434] sm:$0xf]
  %v239 = vld [vmem:[%s1 + $0x438] sm:$0xff]
  %v240 = vld [vmem:[%s1 + $0x440] sm:$0xf]
  %v241 = vld [vmem:[%s1 + $0x444] sm:$0xff]
  %v242 = vld [vmem:[%s1 + $0x44c] sm:$0xf]
  %v243 = vld [vmem:[%s1 + $0x450] sm:$0xff]
  %v244 = vld [vmem:[%s1 + $0x458] sm:$0xf]
  %v245 = vld [vmem:[%s1 + $0x45c] sm:$0xff]
  %v246 = vld [vmem:[%s1 + $0x464] sm:$0xf]
  %v247 = vld [vmem:[%s1 + $0x468] sm:$0xff]
  %v248 = vld [vmem:[%s1 + $0x470] sm:$0xf]
  %v249 = vld [vmem:[%s1 + $0x474] sm:$0xff]
  %v250 = vld [vmem:[%s1 + $0x47c] sm:$0xf]
  %v251 = vld [vmem:[%s1 + $0x480] sm:$0xff]
  %v252 = vld [vmem:[%s1 + $0x488] sm:$0xf]
  %v253 = vld [vmem:[%s1 + $0x48c] sm:$0xff]
  %v254 = vld [vmem:[%s1 + $0x494] sm:$0xf]
  %v255 = vld [vmem:[%s2] sm:$0x7]
  %v257 = vlaneseq
  %v258 = vshrl.u32 %v257, 7
  %v259 = vsub.s32 0, %v258
  %v260 = vrot.slane %v255, %v259
  %v261 = vlaneseq
  %v262 = vshrl.u32 %v261, 7
  %v263 = vsub.s32 1, %v262
  %v264 = vrot.slane %v255, %v263
  %v265 = vlaneseq
  %v266 = vshrl.u32 %v265, 7
  %v267 = vsub.s32 2, %v266
  %v268 = vrot.slane %v255, %v267
  %v468 = vunpack.c.l.b16 %v59
  %v469 = vunpack.c.h.b16 %v59
  %v470 = vunpack.c.l.b16 %v60
  %v471 = vunpack.c.l.b16 %v61
  %v472 = vunpack.c.h.b16 %v61
  %v473 = vunpack.c.l.b16 %v62
  %v474 = vunpack.c.l.b16 %v63
  %v475 = vunpack.c.h.b16 %v63
  %v476 = vunpack.c.l.b16 %v64
  %v477 = vunpack.c.l.b16 %v65
  %v478 = vunpack.c.h.b16 %v65
  %v479 = vunpack.c.l.b16 %v66
  %v480 = vunpack.c.l.b16 %v67
  %v481 = vunpack.c.h.b16 %v67
  %v482 = vunpack.c.l.b16 %v68
  %v483 = vunpack.c.l.b16 %v69
  %v484 = vunpack.c.h.b16 %v69
  %v485 = vunpack.c.l.b16 %v70
  %v486 = vunpack.c.l.b16 %v71
  %v487 = vunpack.c.h.b16 %v71
  %v488 = vunpack.c.l.b16 %v72
  %v489 = vunpack.c.l.b16 %v73
  %v490 = vunpack.c.h.b16 %v73
  %v491 = vunpack.c.l.b16 %v74
  %v492 = vunpack.c.l.b16 %v75
  %v493 = vunpack.c.h.b16 %v75
  %v494 = vunpack.c.l.b16 %v76
  %v495 = vunpack.c.l.b16 %v77
  %v496 = vunpack.c.h.b16 %v77
  %v497 = vunpack.c.l.b16 %v78
  %v498 = vunpack.c.l.b16 %v79
  %v499 = vunpack.c.h.b16 %v79
  %v500 = vunpack.c.l.b16 %v80
  %v501 = vunpack.c.l.b16 %v81
  %v502 = vunpack.c.h.b16 %v81
  %v503 = vunpack.c.l.b16 %v82
  %v504 = vunpack.c.l.b16 %v83
  %v505 = vunpack.c.h.b16 %v83
  %v506 = vunpack.c.l.b16 %v84
  %v507 = vunpack.c.l.b16 %v85
  %v508 = vunpack.c.h.b16 %v85
  %v509 = vunpack.c.l.b16 %v86
  %v510 = vunpack.c.l.b16 %v87
  %v511 = vunpack.c.h.b16 %v87
  %v512 = vunpack.c.l.b16 %v88
  %v513 = vunpack.c.l.b16 %v89
  %v514 = vunpack.c.h.b16 %v89
  %v515 = vunpack.c.l.b16 %v90
  %v516 = vunpack.c.l.b16 %v91
  %v517 = vunpack.c.h.b16 %v91
  %v518 = vunpack.c.l.b16 %v92
  %v519 = vunpack.c.l.b16 %v93
  %v520 = vunpack.c.h.b16 %v93
  %v521 = vunpack.c.l.b16 %v94
  %v522 = vunpack.c.l.b16 %v95
  %v523 = vunpack.c.h.b16 %v95
  %v524 = vunpack.c.l.b16 %v96
  %v525 = vunpack.c.l.b16 %v97
  %v526 = vunpack.c.h.b16 %v97
  %v527 = vunpack.c.l.b16 %v98
  %v528 = vunpack.c.l.b16 %v99
  %v529 = vunpack.c.h.b16 %v99
  %v530 = vunpack.c.l.b16 %v100
  %v531 = vunpack.c.l.b16 %v101
  %v532 = vunpack.c.h.b16 %v101
  %v533 = vunpack.c.l.b16 %v102
  %v534 = vunpack.c.l.b16 %v103
  %v535 = vunpack.c.h.b16 %v103
  %v536 = vunpack.c.l.b16 %v104
  %v537 = vunpack.c.l.b16 %v105
  %v538 = vunpack.c.h.b16 %v105
  %v539 = vunpack.c.l.b16 %v106
  %v540 = vunpack.c.l.b16 %v107
  %v541 = vunpack.c.h.b16 %v107
  %v542 = vunpack.c.l.b16 %v108
  %v543 = vunpack.c.l.b16 %v109
  %v544 = vunpack.c.h.b16 %v109
  %v545 = vunpack.c.l.b16 %v110
  %v546 = vunpack.c.l.b16 %v111
  %v547 = vunpack.c.h.b16 %v111
  %v548 = vunpack.c.l.b16 %v112
  %v549 = vunpack.c.l.b16 %v113
  %v550 = vunpack.c.h.b16 %v113
  %v551 = vunpack.c.l.b16 %v114
  %v552 = vunpack.c.l.b16 %v115
  %v553 = vunpack.c.h.b16 %v115
  %v554 = vunpack.c.l.b16 %v116
  %v555 = vunpack.c.l.b16 %v117
  %v556 = vunpack.c.h.b16 %v117
  %v557 = vunpack.c.l.b16 %v118
  %v558 = vunpack.c.l.b16 %v119
  %v559 = vunpack.c.h.b16 %v119
  %v560 = vunpack.c.l.b16 %v120
  %v561 = vunpack.c.l.b16 %v121
  %v562 = vunpack.c.h.b16 %v121
  %v563 = vunpack.c.l.b16 %v122
  %v564 = vunpack.c.l.b16 %v123
  %v565 = vunpack.c.h.b16 %v123
  %v566 = vunpack.c.l.b16 %v124
  %v567 = vunpack.c.l.b16 %v125
  %v568 = vunpack.c.h.b16 %v125
  %v569 = vunpack.c.l.b16 %v126
  %v570 = vunpack.c.l.b16 %v127
  %v571 = vunpack.c.h.b16 %v127
  %v572 = vunpack.c.l.b16 %v128
  %v573 = vunpack.c.l.b16 %v129
  %v574 = vunpack.c.h.b16 %v129
  %v575 = vunpack.c.l.b16 %v130
  %v576 = vunpack.c.l.b16 %v131
  %v577 = vunpack.c.h.b16 %v131
  %v578 = vunpack.c.l.b16 %v132
  %v579 = vunpack.c.l.b16 %v133
  %v580 = vunpack.c.h.b16 %v133
  %v581 = vunpack.c.l.b16 %v134
  %v582 = vunpack.c.l.b16 %v135
  %v583 = vunpack.c.h.b16 %v135
  %v584 = vunpack.c.l.b16 %v136
  %v585 = vunpack.c.l.b16 %v137
  %v586 = vunpack.c.h.b16 %v137
  %v587 = vunpack.c.l.b16 %v138
  %v588 = vunpack.c.l.b16 %v139
  %v589 = vunpack.c.h.b16 %v139
  %v590 = vunpack.c.l.b16 %v140
  %v591 = vunpack.c.l.b16 %v141
  %v592 = vunpack.c.h.b16 %v141
  %v593 = vunpack.c.l.b16 %v142
  %v594 = vunpack.c.l.b16 %v143
  %v595 = vunpack.c.h.b16 %v143
  %v596 = vunpack.c.l.b16 %v144
  %v597 = vunpack.c.l.b16 %v145
  %v598 = vunpack.c.h.b16 %v145
  %v599 = vunpack.c.l.b16 %v146
  %v600 = vunpack.c.l.b16 %v147
  %v601 = vunpack.c.h.b16 %v147
  %v602 = vunpack.c.l.b16 %v148
  %v603 = vunpack.c.l.b16 %v149
  %v604 = vunpack.c.h.b16 %v149
  %v605 = vunpack.c.l.b16 %v150
  %v606 = vunpack.c.l.b16 %v151
  %v607 = vunpack.c.h.b16 %v151
  %v608 = vunpack.c.l.b16 %v152
  %v609 = vunpack.c.l.b16 %v153
  %v610 = vunpack.c.h.b16 %v153
  %v611 = vunpack.c.l.b16 %v154
  %v612 = vunpack.c.l.b16 %v155
  %v613 = vunpack.c.h.b16 %v155
  %v614 = vunpack.c.l.b16 %v156
  %v615 = vunpack.c.l.b16 %v157
  %v616 = vunpack.c.h.b16 %v157
  %v617 = vunpack.c.l.b16 %v158
  %v618 = vunpack.c.l.b16 %v159
  %v619 = vunpack.c.h.b16 %v159
  %v620 = vunpack.c.l.b16 %v160
  %v621 = vunpack.c.l.b16 %v161
  %v622 = vunpack.c.h.b16 %v161
  %v623 = vunpack.c.l.b16 %v162
  %v624 = vunpack.c.l.b16 %v163
  %v625 = vunpack.c.h.b16 %v163
  %v626 = vunpack.c.l.b16 %v164
  %v627 = vunpack.c.l.b16 %v165
  %v628 = vunpack.c.h.b16 %v165
  %v629 = vunpack.c.l.b16 %v166
  %v630 = vunpack.c.l.b16 %v167
  %v631 = vunpack.c.h.b16 %v167
  %v632 = vunpack.c.l.b16 %v168
  %v633 = vunpack.c.l.b16 %v169
  %v634 = vunpack.c.h.b16 %v169
  %v635 = vunpack.c.l.b16 %v170
  %v636 = vunpack.c.l.b16 %v171
  %v637 = vunpack.c.h.b16 %v171
  %v638 = vunpack.c.l.b16 %v172
  %v639 = vunpack.c.l.b16 %v173
  %v640 = vunpack.c.h.b16 %v173
  %v641 = vunpack.c.l.b16 %v174
  %v642 = vunpack.c.l.b16 %v175
  %v643 = vunpack.c.h.b16 %v175
  %v644 = vunpack.c.l.b16 %v176
  %v645 = vunpack.c.l.b16 %v177
  %v646 = vunpack.c.h.b16 %v177
  %v647 = vunpack.c.l.b16 %v178
  %v648 = vunpack.c.l.b16 %v179
  %v649 = vunpack.c.h.b16 %v179
  %v650 = vunpack.c.l.b16 %v180
  %v651 = vunpack.c.l.b16 %v181
  %v652 = vunpack.c.h.b16 %v181
  %v653 = vunpack.c.l.b16 %v182
  %v654 = vunpack.c.l.b16 %v183
  %v655 = vunpack.c.h.b16 %v183
  %v656 = vunpack.c.l.b16 %v184
  %v657 = vunpack.c.l.b16 %v185
  %v658 = vunpack.c.h.b16 %v185
  %v659 = vunpack.c.l.b16 %v186
  %v660 = vunpack.c.l.b16 %v187
  %v661 = vunpack.c.h.b16 %v187
  %v662 = vunpack.c.l.b16 %v188
  %v663 = vunpack.c.l.b16 %v189
  %v664 = vunpack.c.h.b16 %v189
  %v665 = vunpack.c.l.b16 %v190
  %v666 = vunpack.c.l.b16 %v191
  %v667 = vunpack.c.h.b16 %v191
  %v668 = vunpack.c.l.b16 %v192
  %v669 = vunpack.c.l.b16 %v193
  %v670 = vunpack.c.h.b16 %v193
  %v671 = vunpack.c.l.b16 %v194
  %v672 = vunpack.c.l.b16 %v195
  %v673 = vunpack.c.h.b16 %v195
  %v674 = vunpack.c.l.b16 %v196
  %v675 = vunpack.c.l.b16 %v197
  %v676 = vunpack.c.h.b16 %v197
  %v677 = vunpack.c.l.b16 %v198
  %v678 = vunpack.c.l.b16 %v199
  %v679 = vunpack.c.h.b16 %v199
  %v680 = vunpack.c.l.b16 %v200
  %v681 = vunpack.c.l.b16 %v201
  %v682 = vunpack.c.h.b16 %v201
  %v683 = vunpack.c.l.b16 %v202
  %v684 = vunpack.c.l.b16 %v203
  %v685 = vunpack.c.h.b16 %v203
  %v686 = vunpack.c.l.b16 %v204
  %v687 = vunpack.c.l.b16 %v205
  %v688 = vunpack.c.h.b16 %v205
  %v689 = vunpack.c.l.b16 %v206
  %v690 = vunpack.c.l.b16 %v207
  %v691 = vunpack.c.h.b16 %v207
  %v692 = vunpack.c.l.b16 %v208
  %v693 = vunpack.c.l.b16 %v209
  %v694 = vunpack.c.h.b16 %v209
  %v695 = vunpack.c.l.b16 %v210
  %v696 = vunpack.c.l.b16 %v211
  %v697 = vunpack.c.h.b16 %v211
  %v698 = vunpack.c.l.b16 %v212
  %v699 = vunpack.c.l.b16 %v213
  %v700 = vunpack.c.h.b16 %v213
  %v701 = vunpack.c.l.b16 %v214
  %v702 = vunpack.c.l.b16 %v215
  %v703 = vunpack.c.h.b16 %v215
  %v704 = vunpack.c.l.b16 %v216
  %v705 = vunpack.c.l.b16 %v217
  %v706 = vunpack.c.h.b16 %v217
  %v707 = vunpack.c.l.b16 %v218
  %v708 = vunpack.c.l.b16 %v219
  %v709 = vunpack.c.h.b16 %v219
  %v710 = vunpack.c.l.b16 %v220
  %v711 = vunpack.c.l.b16 %v221
  %v712 = vunpack.c.h.b16 %v221
  %v713 = vunpack.c.l.b16 %v222
  %v714 = vunpack.c.l.b16 %v223
  %v715 = vunpack.c.h.b16 %v223
  %v716 = vunpack.c.l.b16 %v224
  %v717 = vunpack.c.l.b16 %v225
  %v718 = vunpack.c.h.b16 %v225
  %v719 = vunpack.c.l.b16 %v226
  %v720 = vunpack.c.l.b16 %v227
  %v721 = vunpack.c.h.b16 %v227
  %v722 = vunpack.c.l.b16 %v228
  %v723 = vunpack.c.l.b16 %v229
  %v724 = vunpack.c.h.b16 %v229
  %v725 = vunpack.c.l.b16 %v230
  %v726 = vunpack.c.l.b16 %v231
  %v727 = vunpack.c.h.b16 %v231
  %v728 = vunpack.c.l.b16 %v232
  %v729 = vunpack.c.l.b16 %v233
  %v730 = vunpack.c.h.b16 %v233
  %v731 = vunpack.c.l.b16 %v234
  %v732 = vunpack.c.l.b16 %v235
  %v733 = vunpack.c.h.b16 %v235
  %v734 = vunpack.c.l.b16 %v236
  %v735 = vunpack.c.l.b16 %v237
  %v736 = vunpack.c.h.b16 %v237
  %v737 = vunpack.c.l.b16 %v238
  %v738 = vunpack.c.l.b16 %v239
  %v739 = vunpack.c.h.b16 %v239
  %v740 = vunpack.c.l.b16 %v240
  %v741 = vunpack.c.l.b16 %v241
  %v742 = vunpack.c.h.b16 %v241
  %v743 = vunpack.c.l.b16 %v242
  %v744 = vunpack.c.l.b16 %v243
  %v745 = vunpack.c.h.b16 %v243
  %v746 = vunpack.c.l.b16 %v244
  %v747 = vunpack.c.l.b16 %v245
  %v748 = vunpack.c.h.b16 %v245
  %v749 = vunpack.c.l.b16 %v246
  %v750 = vunpack.c.l.b16 %v247
  %v751 = vunpack.c.h.b16 %v247
  %v752 = vunpack.c.l.b16 %v248
  %v753 = vunpack.c.l.b16 %v249
  %v754 = vunpack.c.h.b16 %v249
  %v755 = vunpack.c.l.b16 %v250
  %v756 = vunpack.c.l.b16 %v251
  %v757 = vunpack.c.h.b16 %v251
  %v758 = vunpack.c.l.b16 %v252
  %v759 = vunpack.c.l.b16 %v253
  %v760 = vunpack.c.h.b16 %v253
  %v761 = vunpack.c.l.b16 %v254
  %v762 = vpack.c.b16 %v471, %v468
  %v763 = vpack.c.b16 %v472, %v469
  %v764 = vpack.c.b16 %v473, %v470
  %v765 = vpack.c.b16 %v477, %v474
  %v766 = vpack.c.b16 %v478, %v475
  %v767 = vpack.c.b16 %v479, %v476
  %v768 = vpack.c.b16 %v483, %v480
  %v769 = vpack.c.b16 %v484, %v481
  %v770 = vpack.c.b16 %v485, %v482
  %v771 = vpack.c.b16 %v489, %v486
  %v772 = vpack.c.b16 %v490, %v487
  %v773 = vpack.c.b16 %v491, %v488
  %v774 = vpack.c.b16 %v495, %v492
  %v775 = vpack.c.b16 %v496, %v493
  %v776 = vpack.c.b16 %v497, %v494
  %v777 = vpack.c.b16 %v501, %v498
  %v778 = vpack.c.b16 %v502, %v499
  %v779 = vpack.c.b16 %v503, %v500
  %v780 = vpack.c.b16 %v507, %v504
  %v781 = vpack.c.b16 %v508, %v505
  %v782 = vpack.c.b16 %v509, %v506
  %v783 = vpack.c.b16 %v513, %v510
  %v784 = vpack.c.b16 %v514, %v511
  %v785 = vpack.c.b16 %v515, %v512
  %v786 = vpack.c.b16 %v519, %v516
  %v787 = vpack.c.b16 %v520, %v517
  %v788 = vpack.c.b16 %v521, %v518
  %v789 = vpack.c.b16 %v525, %v522
  %v790 = vpack.c.b16 %v526, %v523
  %v791 = vpack.c.b16 %v527, %v524
  %v792 = vpack.c.b16 %v531, %v528
  %v793 = vpack.c.b16 %v532, %v529
  %v794 = vpack.c.b16 %v533, %v530
  %v795 = vpack.c.b16 %v537, %v534
  %v796 = vpack.c.b16 %v538, %v535
  %v797 = vpack.c.b16 %v539, %v536
  %v798 = vpack.c.b16 %v543, %v540
  %v799 = vpack.c.b16 %v544, %v541
  %v800 = vpack.c.b16 %v545, %v542
  %v801 = vpack.c.b16 %v549, %v546
  %v802 = vpack.c.b16 %v550, %v547
  %v803 = vpack.c.b16 %v551, %v548
  %v804 = vpack.c.b16 %v555, %v552
  %v805 = vpack.c.b16 %v556, %v553
  %v806 = vpack.c.b16 %v557, %v554
  %v807 = vpack.c.b16 %v561, %v558
  %v808 = vpack.c.b16 %v562, %v559
  %v809 = vpack.c.b16 %v563, %v560
  %v810 = vpack.c.b16 %v567, %v564
  %v811 = vpack.c.b16 %v568, %v565
  %v812 = vpack.c.b16 %v569, %v566
  %v813 = vpack.c.b16 %v573, %v570
  %v814 = vpack.c.b16 %v574, %v571
  %v815 = vpack.c.b16 %v575, %v572
  %v816 = vpack.c.b16 %v579, %v576
  %v817 = vpack.c.b16 %v580, %v577
  %v818 = vpack.c.b16 %v581, %v578
  %v819 = vpack.c.b16 %v585, %v582
  %v820 = vpack.c.b16 %v586, %v583
  %v821 = vpack.c.b16 %v587, %v584
  %v822 = vpack.c.b16 %v591, %v588
  %v823 = vpack.c.b16 %v592, %v589
  %v824 = vpack.c.b16 %v593, %v590
  %v825 = vpack.c.b16 %v597, %v594
  %v826 = vpack.c.b16 %v598, %v595
  %v827 = vpack.c.b16 %v599, %v596
  %v828 = vpack.c.b16 %v603, %v600
  %v829 = vpack.c.b16 %v604, %v601
  %v830 = vpack.c.b16 %v605, %v602
  %v831 = vpack.c.b16 %v609, %v606
  %v832 = vpack.c.b16 %v610, %v607
  %v833 = vpack.c.b16 %v611, %v608
  %v834 = vpack.c.b16 %v615, %v612
  %v835 = vpack.c.b16 %v616, %v613
  %v836 = vpack.c.b16 %v617, %v614
  %v837 = vpack.c.b16 %v621, %v618
  %v838 = vpack.c.b16 %v622, %v619
  %v839 = vpack.c.b16 %v623, %v620
  %v840 = vpack.c.b16 %v627, %v624
  %v841 = vpack.c.b16 %v628, %v625
  %v842 = vpack.c.b16 %v629, %v626
  %v843 = vpack.c.b16 %v633, %v630
  %v844 = vpack.c.b16 %v634, %v631
  %v845 = vpack.c.b16 %v635, %v632
  %v846 = vpack.c.b16 %v639, %v636
  %v847 = vpack.c.b16 %v640, %v637
  %v848 = vpack.c.b16 %v641, %v638
  %v849 = vpack.c.b16 %v645, %v642
  %v850 = vpack.c.b16 %v646, %v643
  %v851 = vpack.c.b16 %v647, %v644
  %v852 = vpack.c.b16 %v651, %v648
  %v853 = vpack.c.b16 %v652, %v649
  %v854 = vpack.c.b16 %v653, %v650
  %v855 = vpack.c.b16 %v657, %v654
  %v856 = vpack.c.b16 %v658, %v655
  %v857 = vpack.c.b16 %v659, %v656
  %v858 = vpack.c.b16 %v663, %v660
  %v859 = vpack.c.b16 %v664, %v661
  %v860 = vpack.c.b16 %v665, %v662
  %v861 = vpack.c.b16 %v669, %v666
  %v862 = vpack.c.b16 %v670, %v667
  %v863 = vpack.c.b16 %v671, %v668
  %v864 = vpack.c.b16 %v675, %v672
  %v865 = vpack.c.b16 %v676, %v673
  %v866 = vpack.c.b16 %v677, %v674
  %v867 = vpack.c.b16 %v681, %v678
  %v868 = vpack.c.b16 %v682, %v679
  %v869 = vpack.c.b16 %v683, %v680
  %v870 = vpack.c.b16 %v687, %v684
  %v871 = vpack.c.b16 %v688, %v685
  %v872 = vpack.c.b16 %v689, %v686
  %v873 = vpack.c.b16 %v693, %v690
  %v874 = vpack.c.b16 %v694, %v691
  %v875 = vpack.c.b16 %v695, %v692
  %v876 = vpack.c.b16 %v699, %v696
  %v877 = vpack.c.b16 %v700, %v697
  %v878 = vpack.c.b16 %v701, %v698
  %v879 = vpack.c.b16 %v705, %v702
  %v880 = vpack.c.b16 %v706, %v703
  %v881 = vpack.c.b16 %v707, %v704
  %v882 = vpack.c.b16 %v711, %v708
  %v883 = vpack.c.b16 %v712, %v709
  %v884 = vpack.c.b16 %v713, %v710
  %v885 = vpack.c.b16 %v717, %v714
  %v886 = vpack.c.b16 %v718, %v715
  %v887 = vpack.c.b16 %v719, %v716
  %v888 = vpack.c.b16 %v723, %v720
  %v889 = vpack.c.b16 %v724, %v721
  %v890 = vpack.c.b16 %v725, %v722
  %v891 = vpack.c.b16 %v729, %v726
  %v892 = vpack.c.b16 %v730, %v727
  %v893 = vpack.c.b16 %v731, %v728
  %v894 = vpack.c.b16 %v735, %v732
  %v895 = vpack.c.b16 %v736, %v733
  %v896 = vpack.c.b16 %v737, %v734
  %v897 = vpack.c.b16 %v741, %v738
  %v898 = vpack.c.b16 %v742, %v739
  %v899 = vpack.c.b16 %v743, %v740
  %v900 = vpack.c.b16 %v747, %v744
  %v901 = vpack.c.b16 %v748, %v745
  %v902 = vpack.c.b16 %v749, %v746
  %v903 = vpack.c.b16 %v753, %v750
  %v904 = vpack.c.b16 %v754, %v751
  %v905 = vpack.c.b16 %v755, %v752
  %v906 = vpack.c.b16 %v759, %v756
  %v907 = vpack.c.b16 %v760, %v757
  %v908 = vpack.c.b16 %v761, %v758
  %vm1056 = vcmask 130048
  %v1058 = vsel %vm1056, %v58, 0
  %1060 = vmatprep.subr.bf16.mxu0 %v763
  %1061 = vmatpush1.bf16.msra.mxu0 %v762
  %1062 = vmatprep.subr.bf16.mxu0 %v766
  %1063 = vmatpush1.bf16.msra.mxu0 %v765
  %1064 = vmatprep.subr.bf16.mxu0 %v769
  %1065 = vmatpush1.bf16.msra.mxu0 %v768
  %1066 = vmatprep.subr.bf16.mxu0 %v772
  %1067 = vmatpush1.bf16.msra.mxu0 %v771
  %1068 = vmatprep.subr.bf16.mxu0 %v775
  %1069 = vmatpush1.bf16.msra.mxu0 %v774
  %1070 = vmatprep.subr.bf16.mxu0 %v778
  %1071 = vmatpush1.bf16.msra.mxu0 %v777
  %1072 = vmatprep.subr.bf16.mxu0 %v781
  %1073 = vmatpush1.bf16.msra.mxu0 %v780
  %1074 = vmatprep.subr.bf16.mxu0 %v784
  %1075 = vmatpush1.bf16.msra.mxu0 %v783
  %1076 = vmatprep.subr.bf16.mxu0 %v787
  %1077 = vmatpush1.bf16.msra.mxu0 %v786
  %1078 = vmatprep.subr.bf16.mxu0 %v790
  %1079 = vmatpush1.bf16.msra.mxu0 %v789
  %1080 = vmatprep.subr.bf16.mxu0 %v793
  %1081 = vmatpush1.bf16.msra.mxu0 %v792
  %1082 = vmatprep.subr.bf16.mxu0 %v796
  %1083 = vmatpush1.bf16.msra.mxu0 %v795
  %1084 = vmatprep.subr.bf16.mxu0 %v799
  %1085 = vmatpush1.bf16.msra.mxu0 %v798
  %1086 = vmatprep.subr.bf16.mxu0 %v802
  %1087 = vmatpush1.bf16.msra.mxu0 %v801
  %1088 = vmatprep.subr.bf16.mxu0 %v805
  %1089 = vmatpush1.bf16.msra.mxu0 %v804
  %1090 = vmatprep.subr.bf16.mxu0 %v808
  %1091 = vmatpush1.bf16.msra.mxu0 %v807
  %1092 = vmatprep.mubr.bf16.mxu0 %v53
  %1093 = vmatmul.mubr.bf16.gmra.mrb[0].mxu0 %v52
  %v1094 = vpop.f32.mrb[0].mxu0
  %v1095 = vadd.f32 %v260, %v1094
  %v1096 = vpop.f32.mrb[0].mxu0
  %v1097 = vadd.f32 %v264, %v1096
  %v1098 = vpop.f32.mrb[0].mxu0
  %v1099 = vadd.f32 %v260, %v1098
  %v1100 = vpop.f32.mrb[0].mxu0
  %v1101 = vadd.f32 %v264, %v1100
  %1102 = vdwg.mxu0
  %1103 = vmatprep.subr.bf16.mxu0 %v811
  %1104 = vmatpush1.bf16.msra.mxu0 %v810
  %1105 = vmatprep.subr.bf16.mxu0 %v814
  %1106 = vmatpush1.bf16.msra.mxu0 %v813
  %1107 = vmatprep.subr.bf16.mxu0 %v817
  %1108 = vmatpush1.bf16.msra.mxu0 %v816
  %1109 = vmatprep.subr.bf16.mxu0 %v820
  %1110 = vmatpush1.bf16.msra.mxu0 %v819
  %1111 = vmatprep.subr.bf16.mxu0 %v823
  %1112 = vmatpush1.bf16.msra.mxu0 %v822
  %1113 = vmatprep.subr.bf16.mxu0 %v826
  %1114 = vmatpush1.bf16.msra.mxu0 %v825
  %1115 = vmatprep.subr.bf16.mxu0 %v829
  %1116 = vmatpush1.bf16.msra.mxu0 %v828
  %1117 = vmatprep.subr.bf16.mxu0 %v832
  %1118 = vmatpush1.bf16.msra.mxu0 %v831
  %1119 = vmatprep.subr.bf16.mxu0 %v835
  %1120 = vmatpush1.bf16.msra.mxu0 %v834
  %1121 = vmatprep.subr.bf16.mxu0 %v838
  %1122 = vmatpush1.bf16.msra.mxu0 %v837
  %1123 = vmatprep.subr.bf16.mxu0 %v841
  %1124 = vmatpush1.bf16.msra.mxu0 %v840
  %1125 = vmatprep.subr.bf16.mxu0 %v844
  %1126 = vmatpush1.bf16.msra.mxu0 %v843
  %1127 = vmatprep.subr.bf16.mxu0 %v847
  %1128 = vmatpush1.bf16.msra.mxu0 %v846
  %1129 = vmatprep.subr.bf16.mxu0 %v850
  %1130 = vmatpush1.bf16.msra.mxu0 %v849
  %1131 = vmatprep.subr.bf16.mxu0 %v853
  %1132 = vmatpush1.bf16.msra.mxu0 %v852
  %1133 = vmatprep.subr.bf16.mxu0 %v856
  %1134 = vmatpush1.bf16.msra.mxu0 %v855
  %1135 = vmatprep.mubr.bf16.mxu0 %v55
  %1136 = vmatmul.mubr.bf16.gmra.mrb[0].mxu0 %v54
  %v1137 = vpop.f32.mrb[0].mxu0
  %v1138 = vadd.f32 %v1095, %v1137
  %v1139 = vpop.f32.mrb[0].mxu0
  %v1140 = vadd.f32 %v1097, %v1139
  %v1141 = vpop.f32.mrb[0].mxu0
  %v1142 = vadd.f32 %v1099, %v1141
  %v1143 = vpop.f32.mrb[0].mxu0
  %v1144 = vadd.f32 %v1101, %v1143
  %1145 = vdwg.mxu0
  %1146 = vmatprep.subr.bf16.mxu0 %v859
  %1147 = vmatpush1.bf16.msra.mxu0 %v858
  %1148 = vmatprep.subr.bf16.mxu0 %v862
  %1149 = vmatpush1.bf16.msra.mxu0 %v861
  %1150 = vmatprep.subr.bf16.mxu0 %v865
  %1151 = vmatpush1.bf16.msra.mxu0 %v864
  %1152 = vmatprep.subr.bf16.mxu0 %v868
  %1153 = vmatpush1.bf16.msra.mxu0 %v867
  %1154 = vmatprep.subr.bf16.mxu0 %v871
  %1155 = vmatpush1.bf16.msra.mxu0 %v870
  %1156 = vmatprep.subr.bf16.mxu0 %v874
  %1157 = vmatpush1.bf16.msra.mxu0 %v873
  %1158 = vmatprep.subr.bf16.mxu0 %v877
  %1159 = vmatpush1.bf16.msra.mxu0 %v876
  %1160 = vmatprep.subr.bf16.mxu0 %v880
  %1161 = vmatpush1.bf16.msra.mxu0 %v879
  %1162 = vmatprep.subr.bf16.mxu0 %v883
  %1163 = vmatpush1.bf16.msra.mxu0 %v882
  %1164 = vmatprep.subr.bf16.mxu0 %v886
  %1165 = vmatpush1.bf16.msra.mxu0 %v885
  %1166 = vmatprep.subr.bf16.mxu0 %v889
  %1167 = vmatpush1.bf16.msra.mxu0 %v888
  %1168 = vmatprep.subr.bf16.mxu0 %v892
  %1169 = vmatpush1.bf16.msra.mxu0 %v891
  %1170 = vmatprep.subr.bf16.mxu0 %v895
  %1171 = vmatpush1.bf16.msra.mxu0 %v894
  %1172 = vmatprep.subr.bf16.mxu0 %v898
  %1173 = vmatpush1.bf16.msra.mxu0 %v897
  %1174 = vmatprep.subr.bf16.mxu0 %v901
  %1175 = vmatpush1.bf16.msra.mxu0 %v900
  %1176 = vmatprep.subr.bf16.mxu0 %v904
  %1177 = vmatpush1.bf16.msra.mxu0 %v903
  %1178 = vmatprep.mubr.bf16.mxu0 %v57
  %1179 = vmatmul.mubr.bf16.gmra.mrb[0].mxu0 %v56
  %v1180 = vpop.f32.mrb[0].mxu0
  %v1181 = vadd.f32 %v1138, %v1180
  %v1182 = vpop.f32.mrb[0].mxu0
  %v1183 = vadd.f32 %v1140, %v1182
  %v1184 = vpop.f32.mrb[0].mxu0
  %v1185 = vadd.f32 %v1142, %v1184
  %v1186 = vpop.f32.mrb[0].mxu0
  %v1187 = vadd.f32 %v1144, %v1186
  %1188 = vdwg.mxu0
  %1189 = vmatprep.subr.bf16.mxu0 %v907
  %1190 = vmatpush1.bf16.msra.mxu0 %v906
  %1191 = vmatprep.subr.bf16.mxu0 0
  %1192 = vmatpush1.bf16.msra.mxu0 0
  %1193 = vmatprep.subr.bf16.mxu0 0
  %1194 = vmatpush1.bf16.msra.mxu0 0
  %1195 = vmatprep.subr.bf16.mxu0 0
  %1196 = vmatpush1.bf16.msra.mxu0 0
  %1197 = vmatprep.subr.bf16.mxu0 0
  %1198 = vmatpush1.bf16.msra.mxu0 0
  %1199 = vmatprep.subr.bf16.mxu0 0
  %1200 = vmatpush1.bf16.msra.mxu0 0
  %1201 = vmatprep.subr.bf16.mxu0 0
  %1202 = vmatpush1.bf16.msra.mxu0 0
  %1203 = vmatprep.subr.bf16.mxu0 0
  %1204 = vmatpush1.bf16.msra.mxu0 0
  %1205 = vmatprep.subr.bf16.mxu0 0
  %1206 = vmatpush1.bf16.msra.mxu0 0
  %1207 = vmatprep.subr.bf16.mxu0 0
  %1208 = vmatpush1.bf16.msra.mxu0 0
  %1209 = vmatprep.subr.bf16.mxu0 0
  %1210 = vmatpush1.bf16.msra.mxu0 0
  %1211 = vmatprep.subr.bf16.mxu0 0
  %1212 = vmatpush1.bf16.msra.mxu0 0
  %1213 = vmatprep.subr.bf16.mxu0 0
  %1214 = vmatpush1.bf16.msra.mxu0 0
  %1215 = vmatprep.subr.bf16.mxu0 0
  %1216 = vmatpush1.bf16.msra.mxu0 0
  %1217 = vmatprep.subr.bf16.mxu0 0
  %1218 = vmatpush1.bf16.msra.mxu0 0
  %1219 = vmatprep.subr.bf16.mxu0 0
  %1220 = vmatpush1.bf16.msra.mxu0 0
  %1221 = vmatprep.mubr.bf16.mxu0 0
  %1222 = vmatmul.mubr.bf16.gmra.mrb[0].mxu0 %v1058
  %v1223 = vpop.f32.mrb[0].mxu0
  %v1224 = vadd.f32 %v1181, %v1223
  %v1225 = vpop.f32.mrb[0].mxu0
  %v1226 = vadd.f32 %v1183, %v1225
  %v1227 = vpop.f32.mrb[0].mxu0
  %v1228 = vadd.f32 %v1185, %v1227
  %v1229 = vpop.f32.mrb[0].mxu0
  %v1230 = vadd.f32 %v1187, %v1229
  %1231 = vdwg.mxu0
  %1232 = vmatprep.subr.bf16.mxu0 0
  %1233 = vmatpush1.bf16.msra.mxu0 %v764
  %1234 = vmatprep.subr.bf16.mxu0 0
  %1235 = vmatpush1.bf16.msra.mxu0 %v767
  %1236 = vmatprep.subr.bf16.mxu0 0
  %1237 = vmatpush1.bf16.msra.mxu0 %v770
  %1238 = vmatprep.subr.bf16.mxu0 0
  %1239 = vmatpush1.bf16.msra.mxu0 %v773
  %1240 = vmatprep.subr.bf16.mxu0 0
  %1241 = vmatpush1.bf16.msra.mxu0 %v776
  %1242 = vmatprep.subr.bf16.mxu0 0
  %1243 = vmatpush1.bf16.msra.mxu0 %v779
  %1244 = vmatprep.subr.bf16.mxu0 0
  %1245 = vmatpush1.bf16.msra.mxu0 %v782
  %1246 = vmatprep.subr.bf16.mxu0 0
  %1247 = vmatpush1.bf16.msra.mxu0 %v785
  %1248 = vmatprep.subr.bf16.mxu0 0
  %1249 = vmatpush1.bf16.msra.mxu0 %v788
  %1250 = vmatprep.subr.bf16.mxu0 0
  %1251 = vmatpush1.bf16.msra.mxu0 %v791
  %1252 = vmatprep.subr.bf16.mxu0 0
  %1253 = vmatpush1.bf16.msra.mxu0 %v794
  %1254 = vmatprep.subr.bf16.mxu0 0
  %1255 = vmatpush1.bf16.msra.mxu0 %v797
  %1256 = vmatprep.subr.bf16.mxu0 0
  %1257 = vmatpush1.bf16.msra.mxu0 %v800
  %1258 = vmatprep.subr.bf16.mxu0 0
  %1259 = vmatpush1.bf16.msra.mxu0 %v803
  %1260 = vmatprep.subr.bf16.mxu0 0
  %1261 = vmatpush1.bf16.msra.mxu0 %v806
  %1262 = vmatprep.subr.bf16.mxu0 0
  %1263 = vmatpush1.bf16.msra.mxu0 %v809
  %1264 = vmatprep.mubr.bf16.mxu0 %v53
  %1265 = vmatmul.mubr.bf16.gmra.mrb[0].mxu0 %v52
  %v1266 = vpop.f32.mrb[0].mxu0
  %v1267 = vadd.f32 %v268, %v1266
  %v1268 = vpop.f32.mrb[0].mxu0
  %v1269 = vpop.f32.mrb[0].mxu0
  %v1270 = vadd.f32 %v268, %v1269
  %v1271 = vpop.f32.mrb[0].mxu0
  %1272 = vdwg.mxu0
  %1273 = vmatprep.subr.bf16.mxu0 0
  %1274 = vmatpush1.bf16.msra.mxu0 %v812
  %1275 = vmatprep.subr.bf16.mxu0 0
  %1276 = vmatpush1.bf16.msra.mxu0 %v815
  %1277 = vmatprep.subr.bf16.mxu0 0
  %1278 = vmatpush1.bf16.msra.mxu0 %v818
  %1279 = vmatprep.subr.bf16.mxu0 0
  %1280 = vmatpush1.bf16.msra.mxu0 %v821
  %1281 = vmatprep.subr.bf16.mxu0 0
  %1282 = vmatpush1.bf16.msra.mxu0 %v824
  %1283 = vmatprep.subr.bf16.mxu0 0
  %1284 = vmatpush1.bf16.msra.mxu0 %v827
  %1285 = vmatprep.subr.bf16.mxu0 0
  %1286 = vmatpush1.bf16.msra.mxu0 %v830
  %1287 = vmatprep.subr.bf16.mxu0 0
  %1288 = vmatpush1.bf16.msra.mxu0 %v833
  %1289 = vmatprep.subr.bf16.mxu0 0
  %1290 = vmatpush1.bf16.msra.mxu0 %v836
  %1291 = vmatprep.subr.bf16.mxu0 0
  %1292 = vmatpush1.bf16.msra.mxu0 %v839
  %1293 = vmatprep.subr.bf16.mxu0 0
  %1294 = vmatpush1.bf16.msra.mxu0 %v842
  %1295 = vmatprep.subr.bf16.mxu0 0
  %1296 = vmatpush1.bf16.msra.mxu0 %v845
  %1297 = vmatprep.subr.bf16.mxu0 0
  %1298 = vmatpush1.bf16.msra.mxu0 %v848
  %1299 = vmatprep.subr.bf16.mxu0 0
  %1300 = vmatpush1.bf16.msra.mxu0 %v851
  %1301 = vmatprep.subr.bf16.mxu0 0
  %1302 = vmatpush1.bf16.msra.mxu0 %v854
  %1303 = vmatprep.subr.bf16.mxu0 0
  %1304 = vmatpush1.bf16.msra.mxu0 %v857
  %1305 = vmatprep.mubr.bf16.mxu0 %v55
  %1306 = vmatmul.mubr.bf16.gmra.mrb[0].mxu0 %v54
  %v1307 = vpop.f32.mrb[0].mxu0
  %v1308 = vadd.f32 %v1267, %v1307
  %v1309 = vpop.f32.mrb[0].mxu0
  %v1310 = vpop.f32.mrb[0].mxu0
  %v1311 = vadd.f32 %v1270, %v1310
  %v1312 = vpop.f32.mrb[0].mxu0
  %1313 = vdwg.mxu0
  %1314 = vmatprep.subr.bf16.mxu0 0
  %1315 = vmatpush1.bf16.msra.mxu0 %v860
  %1316 = vmatprep.subr.bf16.mxu0 0
  %1317 = vmatpush1.bf16.msra.mxu0 %v863
  %1318 = vmatprep.subr.bf16.mxu0 0
  %1319 = vmatpush1.bf16.msra.mxu0 %v866
  %1320 = vmatprep.subr.bf16.mxu0 0
  %1321 = vmatpush1.bf16.msra.mxu0 %v869
  %1322 = vmatprep.subr.bf16.mxu0 0
  %1323 = vmatpush1.bf16.msra.mxu0 %v872
  %1324 = vmatprep.subr.bf16.mxu0 0
  %1325 = vmatpush1.bf16.msra.mxu0 %v875
  %1326 = vmatprep.subr.bf16.mxu0 0
  %1327 = vmatpush1.bf16.msra.mxu0 %v878
  %1328 = vmatprep.subr.bf16.mxu0 0
  %1329 = vmatpush1.bf16.msra.mxu0 %v881
  %1330 = vmatprep.subr.bf16.mxu0 0
  %1331 = vmatpush1.bf16.msra.mxu0 %v884
  %1332 = vmatprep.subr.bf16.mxu0 0
  %1333 = vmatpush1.bf16.msra.mxu0 %v887
  %1334 = vmatprep.subr.bf16.mxu0 0
  %1335 = vmatpush1.bf16.msra.mxu0 %v890
  %1336 = vmatprep.subr.bf16.mxu0 0
  %1337 = vmatpush1.bf16.msra.mxu0 %v893
  %1338 = vmatprep.subr.bf16.mxu0 0
  %1339 = vmatpush1.bf16.msra.mxu0 %v896
  %1340 = vmatprep.subr.bf16.mxu0 0
  %1341 = vmatpush1.bf16.msra.mxu0 %v899
  %1342 = vmatprep.subr.bf16.mxu0 0
  %1343 = vmatpush1.bf16.msra.mxu0 %v902
  %1344 = vmatprep.subr.bf16.mxu0 0
  %1345 = vmatpush1.bf16.msra.mxu0 %v905
  %1346 = vmatprep.mubr.bf16.mxu0 %v57
  %1347 = vmatmul.mubr.bf16.gmra.mrb[0].mxu0 %v56
  %v1348 = vpop.f32.mrb[0].mxu0
  %v1349 = vadd.f32 %v1308, %v1348
  %v1350 = vpop.f32.mrb[0].mxu0
  %v1351 = vpop.f32.mrb[0].mxu0
  %v1352 = vadd.f32 %v1311, %v1351
  %v1353 = vpop.f32.mrb[0].mxu0
  %1354 = vdwg.mxu0
  %1355 = vmatprep.subr.bf16.mxu0 0
  %1356 = vmatpush1.bf16.msra.mxu0 %v908
  %1357 = vmatprep.subr.bf16.mxu0 0
  %1358 = vmatpush1.bf16.msra.mxu0 0
  %1359 = vmatprep.subr.bf16.mxu0 0
  %1360 = vmatpush1.bf16.msra.mxu0 0
  %1361 = vmatprep.subr.bf16.mxu0 0
  %1362 = vmatpush1.bf16.msra.mxu0 0
  %1363 = vmatprep.subr.bf16.mxu0 0
  %1364 = vmatpush1.bf16.msra.mxu0 0
  %1365 = vmatprep.subr.bf16.mxu0 0
  %1366 = vmatpush1.bf16.msra.mxu0 0
  %1367 = vmatprep.subr.bf16.mxu0 0
  %1368 = vmatpush1.bf16.msra.mxu0 0
  %1369 = vmatprep.subr.bf16.mxu0 0
  %1370 = vmatpush1.bf16.msra.mxu0 0
  %1371 = vmatprep.subr.bf16.mxu0 0
  %1372 = vmatpush1.bf16.msra.mxu0 0
  %1373 = vmatprep.subr.bf16.mxu0 0
  %1374 = vmatpush1.bf16.msra.mxu0 0
  %1375 = vmatprep.subr.bf16.mxu0 0
  %1376 = vmatpush1.bf16.msra.mxu0 0
  %1377 = vmatprep.subr.bf16.mxu0 0
  %1378 = vmatpush1.bf16.msra.mxu0 0
  %1379 = vmatprep.subr.bf16.mxu0 0
  %1380 = vmatpush1.bf16.msra.mxu0 0
  %1381 = vmatprep.subr.bf16.mxu0 0
  %1382 = vmatpush1.bf16.msra.mxu0 0
  %1383 = vmatprep.subr.bf16.mxu0 0
  %1384 = vmatpush1.bf16.msra.mxu0 0
  %1385 = vmatprep.subr.bf16.mxu0 0
  %1386 = vmatpush1.bf16.msra.mxu0 0
  %1387 = vmatprep.mubr.bf16.mxu0 0
  %1388 = vmatmul.mubr.bf16.gmra.mrb[0].mxu0 %v1058
  %v1389 = vpop.f32.mrb[0].mxu0
  %v1390 = vadd.f32 %v1349, %v1389
  %v1391 = vpop.f32.mrb[0].mxu0
  %v1392 = vpop.f32.mrb[0].mxu0
  %v1393 = vadd.f32 %v1352, %v1392
  %v1394 = vpop.f32.mrb[0].mxu0
  %1395 = vdwg.mxu0
  %v1396 = vmax.f32 %v1224, 0.0
  %v1397 = vmax.f32 %v1226, 0.0
  %v1398 = vmax.f32 %v1390, 0.0
  %v1399 = vmax.f32 %v1228, 0.0
  %v1400 = vmax.f32 %v1230, 0.0
  %v1401 = vmax.f32 %v1393, 0.0
  %v1402 = vld [vmem:[%s3] sm:$0xff]
  %v1403 = vld [vmem:[%s3 + $0x8] sm:$0xff]
  %v1404 = vld [vmem:[%s3 + $0x10] sm:$0xff]
  %v1405 = vld [vmem:[%s3 + $0x18] sm:$0xff]
  %v1406 = vld [vmem:[%s3 + $0x20] sm:$0xff]
  %v1407 = vld [vmem:[%s3 + $0x28] sm:$0xff]
  %v1408 = vld [vmem:[%s3 + $0x30] sm:$0xff]
  %v1409 = vld [vmem:[%s3 + $0x38] sm:$0xff]
  %v1410 = vld [vmem:[%s3 + $0x40] sm:$0xff]
  %v1411 = vld [vmem:[%s3 + $0x48] sm:$0xff]
  %v1412 = vld [vmem:[%s3 + $0x50] sm:$0xff]
  %v1413 = vld [vmem:[%s3 + $0x58] sm:$0xff]
  %v1414 = vld [vmem:[%s3 + $0x60] sm:$0xff]
  %v1415 = vld [vmem:[%s3 + $0x68] sm:$0xff]
  %v1416 = vld [vmem:[%s3 + $0x70] sm:$0xff]
  %v1417 = vld [vmem:[%s3 + $0x78] sm:$0xff]
  %v1418 = vld [vmem:[%s3 + $0x80] sm:$0xff]
  %v1419 = vld [vmem:[%s3 + $0x88] sm:$0xff]
  %v1420 = vld [vmem:[%s3 + $0x90] sm:$0xff]
  %v1421 = vld [vmem:[%s3 + $0x98] sm:$0xff]
  %v1422 = vld [vmem:[%s3 + $0xa0] sm:$0xff]
  %v1423 = vld [vmem:[%s3 + $0xa8] sm:$0xff]
  %v1424 = vld [vmem:[%s3 + $0xb0] sm:$0xff]
  %v1425 = vld [vmem:[%s3 + $0xb8] sm:$0xff]
  %v1426 = vld [vmem:[%s3 + $0xc0] sm:$0xff]
  %v1427 = vld [vmem:[%s3 + $0xc8] sm:$0xff]
  %v1428 = vld [vmem:[%s3 + $0xd0] sm:$0xff]
  %v1429 = vld [vmem:[%s3 + $0xd8] sm:$0xff]
  %v1430 = vld [vmem:[%s3 + $0xe0] sm:$0xff]
  %v1431 = vld [vmem:[%s3 + $0xe8] sm:$0xff]
  %v1432 = vld [vmem:[%s3 + $0xf0] sm:$0xff]
  %v1433 = vld [vmem:[%s3 + $0xf8] sm:$0xff]
  %v1434 = vld [vmem:[%s3 + $0x100] sm:$0xff]
  %v1435 = vld [vmem:[%s3 + $0x108] sm:$0xff]
  %v1436 = vld [vmem:[%s3 + $0x110] sm:$0xff]
  %v1437 = vld [vmem:[%s3 + $0x118] sm:$0xff]
  %v1438 = vld [vmem:[%s3 + $0x120] sm:$0xff]
  %v1439 = vld [vmem:[%s3 + $0x128] sm:$0xff]
  %v1440 = vld [vmem:[%s3 + $0x130] sm:$0xff]
  %v1441 = vld [vmem:[%s3 + $0x138] sm:$0xff]
  %v1442 = vld [vmem:[%s3 + $0x140] sm:$0xff]
  %v1443 = vld [vmem:[%s3 + $0x148] sm:$0xff]
  %v1444 = vld [vmem:[%s3 + $0x150] sm:$0xff]
  %v1445 = vld [vmem:[%s3 + $0x158] sm:$0xff]
  %v1446 = vld [vmem:[%s3 + $0x160] sm:$0xff]
  %v1447 = vld [vmem:[%s3 + $0x168] sm:$0xff]
  %v1448 = vld [vmem:[%s3 + $0x170] sm:$0xff]
  %v1449 = vld [vmem:[%s3 + $0x178] sm:$0xff]
  %v1450 = vld [vmem:[%s3 + $0x180] sm:$0xff]
  %v1451 = vld [vmem:[%s3 + $0x188] sm:$0xff]
  %v1452 = vld [vmem:[%s3 + $0x190] sm:$0xff]
  %v1453 = vld [vmem:[%s3 + $0x198] sm:$0xff]
  %v1454 = vld [vmem:[%s3 + $0x1a0] sm:$0xff]
  %v1455 = vld [vmem:[%s3 + $0x1a8] sm:$0xff]
  %v1456 = vld [vmem:[%s3 + $0x1b0] sm:$0xff]
  %v1457 = vld [vmem:[%s3 + $0x1b8] sm:$0xff]
  %v1458 = vld [vmem:[%s3 + $0x1c0] sm:$0xff]
  %v1459 = vld [vmem:[%s3 + $0x1c8] sm:$0xff]
  %v1460 = vld [vmem:[%s3 + $0x1d0] sm:$0xff]
  %v1461 = vld [vmem:[%s3 + $0x1d8] sm:$0xff]
  %v1462 = vld [vmem:[%s3 + $0x1e0] sm:$0xff]
  %v1463 = vld [vmem:[%s3 + $0x1e8] sm:$0xff]
  %v1464 = vld [vmem:[%s3 + $0x1f0] sm:$0xff]
  %v1465 = vld [vmem:[%s3 + $0x1f8] sm:$0xff]
  %v1466 = vld [vmem:[%s3 + $0x200] sm:$0xff]
  %v1467 = vld [vmem:[%s3 + $0x208] sm:$0xff]
  %v1468 = vld [vmem:[%s3 + $0x210] sm:$0xff]
  %v1469 = vld [vmem:[%s3 + $0x218] sm:$0xff]
  %v1470 = vld [vmem:[%s3 + $0x220] sm:$0xff]
  %v1471 = vld [vmem:[%s3 + $0x228] sm:$0xff]
  %v1472 = vld [vmem:[%s3 + $0x230] sm:$0xff]
  %v1473 = vld [vmem:[%s3 + $0x238] sm:$0xff]
  %v1474 = vld [vmem:[%s3 + $0x240] sm:$0xff]
  %v1475 = vld [vmem:[%s3 + $0x248] sm:$0xff]
  %v1476 = vld [vmem:[%s3 + $0x250] sm:$0xf]
  %v1477 = vld [vmem:[%s3 + $0x258] sm:$0xf]
  %v1478 = vld [vmem:[%s4] sm:$0x3]
  %v1480 = vlaneseq
  %v1481 = vshrl.u32 %v1480, 7
  %v1482 = vsub.s32 0, %v1481
  %v1483 = vrot.slane %v1478, %v1482
  %v1484 = vlaneseq
  %v1485 = vshrl.u32 %v1484, 7
  %v1486 = vsub.s32 1, %v1485
  %v1487 = vrot.slane %v1478, %v1486
  %vm1490 = vcmask 359424
  %v1492 = vsel %vm1490, %v1398, 0
  %v1495 = vsel %vm1490, %v1401, 0
  %vm1497 = vcmask 1043456
  %v1499 = vsel %vm1497, %v1476, 0
  %v1502 = vsel %vm1497, %v1477, 0
  %1504 = vmatprep.subr.mxu0 %v1403
  %1505 = vmatpush1.msra.mxu0 %v1402
  %1506 = vmatprep.subr.mxu0 %v1405
  %1507 = vmatpush1.msra.mxu0 %v1404
  %1508 = vmatprep.subr.mxu0 %v1407
  %1509 = vmatpush1.msra.mxu0 %v1406
  %1510 = vmatprep.subr.mxu0 %v1409
  %1511 = vmatpush1.msra.mxu0 %v1408
  %1512 = vmatprep.subr.mxu0 %v1411
  %1513 = vmatpush1.msra.mxu0 %v1410
  %1514 = vmatprep.subr.mxu0 %v1413
  %1515 = vmatpush1.msra.mxu0 %v1412
  %1516 = vmatprep.subr.mxu0 %v1415
  %1517 = vmatpush1.msra.mxu0 %v1414
  %1518 = vmatprep.subr.mxu0 %v1417
  %1519 = vmatpush1.msra.mxu0 %v1416
  %1520 = vmatprep.subr.mxu0 %v1419
  %1521 = vmatpush1.msra.mxu0 %v1418
  %1522 = vmatprep.subr.mxu0 %v1421
  %1523 = vmatpush1.msra.mxu0 %v1420
  %1524 = vmatprep.subr.mxu0 %v1423
  %1525 = vmatpush1.msra.mxu0 %v1422
  %1526 = vmatprep.subr.mxu0 %v1425
  %1527 = vmatpush1.msra.mxu0 %v1424
  %1528 = vmatprep.subr.mxu0 %v1427
  %1529 = vmatpush1.msra.mxu0 %v1426
  %1530 = vmatprep.subr.mxu0 %v1429
  %1531 = vmatpush1.msra.mxu0 %v1428
  %1532 = vmatprep.subr.mxu0 %v1431
  %1533 = vmatpush1.msra.mxu0 %v1430
  %1534 = vmatprep.subr.mxu0 %v1433
  %1535 = vmatpush1.msra.mxu0 %v1432
  %1536 = vmatprep.subr.mxu0 %v1435
  %1537 = vmatpush1.msra.mxu0 %v1434
  %1538 = vmatprep.subr.mxu0 %v1437
  %1539 = vmatpush1.msra.mxu0 %v1436
  %1540 = vmatprep.subr.mxu0 %v1439
  %1541 = vmatpush1.msra.mxu0 %v1438
  %1542 = vmatprep.subr.mxu0 %v1441
  %1543 = vmatpush1.msra.mxu0 %v1440
  %1544 = vmatprep.subr.mxu0 %v1443
  %1545 = vmatpush1.msra.mxu0 %v1442
  %1546 = vmatprep.subr.mxu0 %v1445
  %1547 = vmatpush1.msra.mxu0 %v1444
  %1548 = vmatprep.subr.mxu0 %v1447
  %1549 = vmatpush1.msra.mxu0 %v1446
  %1550 = vmatprep.subr.mxu0 %v1449
  %1551 = vmatpush1.msra.mxu0 %v1448
  %1552 = vmatprep.subr.mxu0 %v1451
  %1553 = vmatpush1.msra.mxu0 %v1450
  %1554 = vmatprep.subr.mxu0 %v1453
  %1555 = vmatpush1.msra.mxu0 %v1452
  %1556 = vmatprep.subr.mxu0 %v1455
  %1557 = vmatpush1.msra.mxu0 %v1454
  %1558 = vmatprep.subr.mxu0 %v1457
  %1559 = vmatpush1.msra.mxu0 %v1456
  %1560 = vmatprep.subr.mxu0 %v1459
  %1561 = vmatpush1.msra.mxu0 %v1458
  %1562 = vmatprep.subr.mxu0 %v1461
  %1563 = vmatpush1.msra.mxu0 %v1460
  %1564 = vmatprep.subr.mxu0 %v1463
  %1565 = vmatpush1.msra.mxu0 %v1462
  %1566 = vmatprep.subr.mxu0 %v1465
  %1567 = vmatpush1.msra.mxu0 %v1464
  %1568 = vmatprep.mubr.f32.mxu0 %v1397
  %1569 = vmatmul.mubr.f32.gmra.mrb[0].mxu0 %v1396
  %v1570 = vpop.f32.mrb[0].mxu0
  %v1571 = vadd.f32 %v1483, %v1570
  %v1572 = vpop.f32.mrb[0].mxu0
  %v1573 = vadd.f32 %v1487, %v1572
  %1574 = vmatprep.mubr.f32.mxu0 %v1400
  %1575 = vmatmul.mubr.f32.gmra.mrb[0].mxu0 %v1399
  %v1576 = vpop.f32.mrb[0].mxu0
  %v1577 = vadd.f32 %v1483, %v1576
  %v1578 = vpop.f32.mrb[0].mxu0
  %v1579 = vadd.f32 %v1487, %v1578
  %1580 = vdwg.mxu0
  %1581 = vmatprep.subr.mxu0 %v1467
  %1582 = vmatpush1.msra.mxu0 %v1466
  %1583 = vmatprep.subr.mxu0 %v1469
  %1584 = vmatpush1.msra.mxu0 %v1468
  %1585 = vmatprep.subr.mxu0 %v1471
  %1586 = vmatpush1.msra.mxu0 %v1470
  %1587 = vmatprep.subr.mxu0 %v1473
  %1588 = vmatpush1.msra.mxu0 %v1472
  %1589 = vmatprep.subr.mxu0 %v1475
  %1590 = vmatpush1.msra.mxu0 %v1474
  %1591 = vmatprep.subr.mxu0 %v1502
  %1592 = vmatpush1.msra.mxu0 %v1499
  %1593 = vmatprep.subr.mxu0 0.0
  %1594 = vmatpush1.msra.mxu0 0.0
  %1595 = vmatprep.subr.mxu0 0.0
  %1596 = vmatpush1.msra.mxu0 0.0
  %1597 = vmatprep.subr.mxu0 0.0
  %1598 = vmatpush1.msra.mxu0 0.0
  %1599 = vmatprep.subr.mxu0 0.0
  %1600 = vmatpush1.msra.mxu0 0.0
  %1601 = vmatprep.subr.mxu0 0.0
  %1602 = vmatpush1.msra.mxu0 0.0
  %1603 = vmatprep.subr.mxu0 0.0
  %1604 = vmatpush1.msra.mxu0 0.0
  %1605 = vmatprep.subr.mxu0 0.0
  %1606 = vmatpush1.msra.mxu0 0.0
  %1607 = vmatprep.subr.mxu0 0.0
  %1608 = vmatpush1.msra.mxu0 0.0
  %1609 = vmatprep.subr.mxu0 0.0
  %1610 = vmatpush1.msra.mxu0 0.0
  %1611 = vmatprep.subr.mxu0 0.0
  %1612 = vmatpush1.msra.mxu0 0.0
  %1613 = vmatprep.subr.mxu0 0.0
  %1614 = vmatpush1.msra.mxu0 0.0
  %1615 = vmatprep.subr.mxu0 0.0
  %1616 = vmatpush1.msra.mxu0 0.0
  %1617 = vmatprep.subr.mxu0 0.0
  %1618 = vmatpush1.msra.mxu0 0.0
  %1619 = vmatprep.subr.mxu0 0.0
  %1620 = vmatpush1.msra.mxu0 0.0
  %1621 = vmatprep.subr.mxu0 0.0
  %1622 = vmatpush1.msra.mxu0 0.0
  %1623 = vmatprep.subr.mxu0 0.0
  %1624 = vmatpush1.msra.mxu0 0.0
  %1625 = vmatprep.subr.mxu0 0.0
  %1626 = vmatpush1.msra.mxu0 0.0
  %1627 = vmatprep.subr.mxu0 0.0
  %1628 = vmatpush1.msra.mxu0 0.0
  %1629 = vmatprep.subr.mxu0 0.0
  %1630 = vmatpush1.msra.mxu0 0.0
  %1631 = vmatprep.subr.mxu0 0.0
  %1632 = vmatpush1.msra.mxu0 0.0
  %1633 = vmatprep.subr.mxu0 0.0
  %1634 = vmatpush1.msra.mxu0 0.0
  %1635 = vmatprep.subr.mxu0 0.0
  %1636 = vmatpush1.msra.mxu0 0.0
  %1637 = vmatprep.subr.mxu0 0.0
  %1638 = vmatpush1.msra.mxu0 0.0
  %1639 = vmatprep.subr.mxu0 0.0
  %1640 = vmatpush1.msra.mxu0 0.0
  %1641 = vmatprep.subr.mxu0 0.0
  %1642 = vmatpush1.msra.mxu0 0.0
  %1643 = vmatprep.subr.mxu0 0.0
  %1644 = vmatpush1.msra.mxu0 0.0
  %1645 = vmatprep.mubr.f32.mxu0 0.0
  %1646 = vmatmul.mubr.f32.gmra.mrb[0].mxu0 %v1492
  %v1647 = vpop.f32.mrb[0].mxu0
  %v1648 = vadd.f32 %v1571, %v1647
  %v1649 = vpop.f32.mrb[0].mxu0
  %v1650 = vadd.f32 %v1573, %v1649
  %1651 = vmatprep.mubr.f32.mxu0 0.0
  %1652 = vmatmul.mubr.f32.gmra.mrb[0].mxu0 %v1495
  %v1653 = vpop.f32.mrb[0].mxu0
  %v1654 = vadd.f32 %v1577, %v1653
  %v1655 = vpop.f32.mrb[0].mxu0
  %v1656 = vadd.f32 %v1579, %v1655
  %1657 = vdwg.mxu0
  %v1658 = vld [vmem:[%s9] sm:$0xff]
  %v1659 = vld [vmem:[%s9 + $0x8] sm:$0xff]
  %v1660 = vmul.f32 %v1650, 0.5
  %v1661 = vmul.f32 %v1656, 0.5
  %v1662 = vmul.f32 %v1660, 1.442695
  %v1663 = vpow.pop %v1662
  %v1664 = vmul.f32 %v1661, 1.442695
  %v1665 = vpow.pop %v1664
  %v1666 = vmul.f32 %v1658, %v1663
  %v1667 = vmul.f32 %v1659, %v1665
  %v1668 = vadd.f32 %v1648, %v1666
  %v1669 = vadd.f32 %v1654, %v1667
  %v1670 = vpack.c.bf16 %v1669, %v1668
  %v1671 = vld [vmem:[%s5] sm:$0xff]
  %v1672 = vld [vmem:[%s5 + $0x8] sm:$0xf]
  %v1673 = vld [vmem:[%s5 + $0xc] sm:$0xff]
  %v1674 = vld [vmem:[%s5 + $0x14] sm:$0xf]
  %v1675 = vld [vmem:[%s5 + $0x18] sm:$0x33]
  %v1676 = vld [vmem:[%s5 + $0x20] sm:$0x3]
  %v1677 = vld [vmem:[%s6] sm:$0x7]
  %v1679 = vlaneseq
  %v1680 = vshrl.u32 %v1679, 7
  %v1681 = vsub.s32 0, %v1680
  %v1682 = vrot.slane %v1677, %v1681
  %v1683 = vlaneseq
  %v1684 = vshrl.u32 %v1683, 7
  %v1685 = vsub.s32 1, %v1684
  %v1686 = vrot.slane %v1677, %v1685
  %v1687 = vlaneseq
  %v1688 = vshrl.u32 %v1687, 7
  %v1689 = vsub.s32 2, %v1688
  %v1690 = vrot.slane %v1677, %v1689
  %v1700 = vunpack.c.l.b16 %v1671
  %v1701 = vunpack.c.h.b16 %v1671
  %v1702 = vunpack.c.l.b16 %v1672
  %v1703 = vunpack.c.l.b16 %v1673
  %v1704 = vunpack.c.h.b16 %v1673
  %v1705 = vunpack.c.l.b16 %v1674
  %v1706 = vunpack.c.l.b16 %v1675
  %v1707 = vunpack.c.h.b16 %v1675
  %v1708 = vunpack.c.l.b16 %v1676
  %v1709 = vpack.c.b16 %v1703, %v1700
  %v1710 = vpack.c.b16 %v1704, %v1701
  %v1711 = vpack.c.b16 %v1705, %v1702
  %v1712 = vpack.c.b16 %v1706, %v1706
  %v1713 = vpack.c.b16 %v1707, %v1707
  %v1714 = vpack.c.b16 %v1708, %v1708
  %vm1718 = vcmask 162816
  %v1720 = vsel %vm1718, %v1670, 0
  %vm1722 = vcmask 1041408
  %v1724 = vsel %vm1722, %v1712, 0
  %v1727 = vsel %vm1722, %v1713, 0
  %v1730 = vsel %vm1722, %v1714, 0
  %1732 = vmatprep.subr.bf16.mxu0 %v1710
  %1733 = vmatpush1.bf16.msra.mxu0 %v1709
  %1734 = vmatprep.subr.bf16.mxu0 %v1727
  %1735 = vmatpush1.bf16.msra.mxu0 %v1724
  %1736 = vmatprep.subr.bf16.mxu0 0
  %1737 = vmatpush1.bf16.msra.mxu0 0
  %1738 = vmatprep.subr.bf16.mxu0 0
  %1739 = vmatpush1.bf16.msra.mxu0 0
  %1740 = vmatprep.subr.bf16.mxu0 0
  %1741 = vmatpush1.bf16.msra.mxu0 0
  %1742 = vmatprep.subr.bf16.mxu0 0
  %1743 = vmatpush1.bf16.msra.mxu0 0
  %1744 = vmatprep.subr.bf16.mxu0 0
  %1745 = vmatpush1.bf16.msra.mxu0 0
  %1746 = vmatprep.subr.bf16.mxu0 0
  %1747 = vmatpush1.bf16.msra.mxu0 0
  %1748 = vmatprep.subr.bf16.mxu0 0
  %1749 = vmatpush1.bf16.msra.mxu0 0
  %1750 = vmatprep.subr.bf16.mxu0 0
  %1751 = vmatpush1.bf16.msra.mxu0 0
  %1752 = vmatprep.subr.bf16.mxu0 0
  %1753 = vmatpush1.bf16.msra.mxu0 0
  %1754 = vmatprep.subr.bf16.mxu0 0
  %1755 = vmatpush1.bf16.msra.mxu0 0
  %1756 = vmatprep.subr.bf16.mxu0 0
  %1757 = vmatpush1.bf16.msra.mxu0 0
  %1758 = vmatprep.subr.bf16.mxu0 0
  %1759 = vmatpush1.bf16.msra.mxu0 0
  %1760 = vmatprep.subr.bf16.mxu0 0
  %1761 = vmatpush1.bf16.msra.mxu0 0
  %1762 = vmatprep.subr.bf16.mxu0 0
  %1763 = vmatpush1.bf16.msra.mxu0 0
  %1764 = vmatprep.mubr.bf16.mxu0 0
  %1765 = vmatmul.mubr.bf16.gmra.mrb[0].mxu0 %v1720
  %v1766 = vpop.f32.mrb[0].mxu0
  %v1767 = vadd.f32 %v1682, %v1766
  %v1768 = vpop.f32.mrb[0].mxu0
  %v1769 = vadd.f32 %v1686, %v1768
  %v1770 = vpop.f32.mrb[0].mxu0
  %v1771 = vadd.f32 %v1682, %v1770
  %v1772 = vpop.f32.mrb[0].mxu0
  %v1773 = vadd.f32 %v1686, %v1772
  %1774 = vdwg.mxu0
  %1775 = vmatprep.subr.bf16.mxu0 0
  %1776 = vmatpush1.bf16.msra.mxu0 %v1711
  %1777 = vmatprep.subr.bf16.mxu0 0
  %1778 = vmatpush1.bf16.msra.mxu0 %v1730
  %1779 = vmatprep.subr.bf16.mxu0 0
  %1780 = vmatpush1.bf16.msra.mxu0 0
  %1781 = vmatprep.subr.bf16.mxu0 0
  %1782 = vmatpush1.bf16.msra.mxu0 0
  %1783 = vmatprep.subr.bf16.mxu0 0
  %1784 = vmatpush1.bf16.msra.mxu0 0
  %1785 = vmatprep.subr.bf16.mxu0 0
  %1786 = vmatpush1.bf16.msra.mxu0 0
  %1787 = vmatprep.subr.bf16.mxu0 0
  %1788 = vmatpush1.bf16.msra.mxu0 0
  %1789 = vmatprep.subr.bf16.mxu0 0
  %1790 = vmatpush1.bf16.msra.mxu0 0
  %1791 = vmatprep.subr.bf16.mxu0 0
  %1792 = vmatpush1.bf16.msra.mxu0 0
  %1793 = vmatprep.subr.bf16.mxu0 0
  %1794 = vmatpush1.bf16.msra.mxu0 0
  %1795 = vmatprep.subr.bf16.mxu0 0
  %1796 = vmatpush1.bf16.msra.mxu0 0
  %1797 = vmatprep.subr.bf16.mxu0 0
  %1798 = vmatpush1.bf16.msra.mxu0 0
  %1799 = vmatprep.subr.bf16.mxu0 0
  %1800 = vmatpush1.bf16.msra.mxu0 0
  %1801 = vmatprep.subr.bf16.mxu0 0
  %1802 = vmatpush1.bf16.msra.mxu0 0
  %1803 = vmatprep.subr.bf16.mxu0 0
  %1804 = vmatpush1.bf16.msra.mxu0 0
  %1805 = vmatprep.subr.bf16.mxu0 0
  %1806 = vmatpush1.bf16.msra.mxu0 0
  %1807 = vmatprep.mubr.bf16.mxu0 0
  %1808 = vmatmul.mubr.bf16.gmra.mrb[0].mxu0 %v1720
  %v1809 = vpop.f32.mrb[0].mxu0
  %v1810 = vadd.f32 %v1690, %v1809
  %v1811 = vpop.f32.mrb[0].mxu0
  %v1812 = vpop.f32.mrb[0].mxu0
  %v1813 = vadd.f32 %v1690, %v1812
  %v1814 = vpop.f32.mrb[0].mxu0
  %1815 = vdwg.mxu0
  %v1816 = vmax.f32 %v1767, 0.0
  %v1817 = vmax.f32 %v1769, 0.0
  %v1818 = vmax.f32 %v1810, 0.0
  %v1819 = vmax.f32 %v1771, 0.0
  %v1820 = vmax.f32 %v1773, 0.0
  %v1821 = vmax.f32 %v1813, 0.0
  %v1822 = vpack.c.bf16 %v1819, %v1816
  %v1823 = vpack.c.bf16 %v1820, %v1817
  %v1824 = vpack.c.bf16 %v1821, %v1818
  %v1825 = vld [vmem:[%s7] sm:$0xff]
  %v1826 = vld [vmem:[%s7 + $0x8] sm:$0xff]
  %v1827 = vld [vmem:[%s7 + $0x10] sm:$0xff]
  %v1828 = vld [vmem:[%s7 + $0x18] sm:$0xf]
  %v1829 = vld [vmem:[%s7 + $0x1c] sm:$0xff]
  %v1830 = vld [vmem:[%s7 + $0x24] sm:$0xff]
  %v1831 = vld [vmem:[%s7 + $0x2c] sm:$0xff]
  %v1832 = vld [vmem:[%s7 + $0x34] sm:$0xf]
  %v1833 = vld [vmem:[%s7 + $0x38] sm:$0xff]
  %v1834 = vld [vmem:[%s7 + $0x40] sm:$0xff]
  %v1835 = vld [vmem:[%s7 + $0x48] sm:$0xff]
  %v1836 = vld [vmem:[%s7 + $0x50] sm:$0xf]
  %v1837 = vld [vmem:[%s7 + $0x54] sm:$0xff]
  %v1838 = vld [vmem:[%s7 + $0x5c] sm:$0xff]
  %v1839 = vld [vmem:[%s7 + $0x64] sm:$0xff]
  %v1840 = vld [vmem:[%s7 + $0x6c] sm:$0xf]
  %v1841 = vld [vmem:[%s7 + $0x70] sm:$0xff]
  %v1842 = vld [vmem:[%s7 + $0x78] sm:$0xff]
  %v1843 = vld [vmem:[%s7 + $0x80] sm:$0xff]
  %v1844 = vld [vmem:[%s7 + $0x88] sm:$0xf]
  %v1845 = vld [vmem:[%s7 + $0x8c] sm:$0xff]
  %v1846 = vld [vmem:[%s7 + $0x94] sm:$0xff]
  %v1847 = vld [vmem:[%s7 + $0x9c] sm:$0xff]
  %v1848 = vld [vmem:[%s7 + $0xa4] sm:$0xf]
  %v1849 = vld [vmem:[%s7 + $0xa8] sm:$0xff]
  %v1850 = vld [vmem:[%s7 + $0xb0] sm:$0xff]
  %v1851 = vld [vmem:[%s7 + $0xb8] sm:$0xff]
  %v1852 = vld [vmem:[%s7 + $0xc0] sm:$0xf]
  %v1853 = vld [vmem:[%s7 + $0xc4] sm:$0xff]
  %v1854 = vld [vmem:[%s7 + $0xcc] sm:$0xff]
  %v1855 = vld [vmem:[%s7 + $0xd4] sm:$0xff]
  %v1856 = vld [vmem:[%s7 + $0xdc] sm:$0xf]
  %v1857 = vld [vmem:[%s7 + $0xe0] sm:$0xff]
  %v1858 = vld [vmem:[%s7 + $0xe8] sm:$0xff]
  %v1859 = vld [vmem:[%s7 + $0xf0] sm:$0xff]
  %v1860 = vld [vmem:[%s7 + $0xf8] sm:$0xf]
  %v1861 = vld [vmem:[%s7 + $0xfc] sm:$0xff]
  %v1862 = vld [vmem:[%s7 + $0x104] sm:$0xff]
  %v1863 = vld [vmem:[%s7 + $0x10c] sm:$0xff]
  %v1864 = vld [vmem:[%s7 + $0x114] sm:$0xf]
  %v1865 = vld [vmem:[%s7 + $0x118] sm:$0xff]
  %v1866 = vld [vmem:[%s7 + $0x120] sm:$0xff]
  %v1867 = vld [vmem:[%s7 + $0x128] sm:$0xff]
  %v1868 = vld [vmem:[%s7 + $0x130] sm:$0xf]
  %v1869 = vld [vmem:[%s7 + $0x134] sm:$0xff]
  %v1870 = vld [vmem:[%s7 + $0x13c] sm:$0xff]
  %v1871 = vld [vmem:[%s7 + $0x144] sm:$0xff]
  %v1872 = vld [vmem:[%s7 + $0x14c] sm:$0xf]
  %v1873 = vld [vmem:[%s7 + $0x150] sm:$0xff]
  %v1874 = vld [vmem:[%s7 + $0x158] sm:$0xff]
  %v1875 = vld [vmem:[%s7 + $0x160] sm:$0xff]
  %v1876 = vld [vmem:[%s7 + $0x168] sm:$0xf]
  %v1877 = vld [vmem:[%s7 + $0x16c] sm:$0xff]
  %v1878 = vld [vmem:[%s7 + $0x174] sm:$0xff]
  %v1879 = vld [vmem:[%s7 + $0x17c] sm:$0xff]
  %v1880 = vld [vmem:[%s7 + $0x184] sm:$0xf]
  %v1881 = vld [vmem:[%s7 + $0x188] sm:$0xff]
  %v1882 = vld [vmem:[%s7 + $0x190] sm:$0xff]
  %v1883 = vld [vmem:[%s7 + $0x198] sm:$0xff]
  %v1884 = vld [vmem:[%s7 + $0x1a0] sm:$0xf]
  %v1885 = vld [vmem:[%s7 + $0x1a4] sm:$0xff]
  %v1886 = vld [vmem:[%s7 + $0x1ac] sm:$0xff]
  %v1887 = vld [vmem:[%s7 + $0x1b4] sm:$0xff]
  %v1888 = vld [vmem:[%s7 + $0x1bc] sm:$0xf]
  %v1889 = vld [vmem:[%s7 + $0x1c0] sm:$0xff]
  %v1890 = vld [vmem:[%s7 + $0x1c8] sm:$0xff]
  %v1891 = vld [vmem:[%s7 + $0x1d0] sm:$0xff]
  %v1892 = vld [vmem:[%s7 + $0x1d8] sm:$0xf]
  %v1893 = vld [vmem:[%s7 + $0x1dc] sm:$0xff]
  %v1894 = vld [vmem:[%s7 + $0x1e4] sm:$0xff]
  %v1895 = vld [vmem:[%s7 + $0x1ec] sm:$0xff]
  %v1896 = vld [vmem:[%s7 + $0x1f4] sm:$0xf]
  %v1897 = vld [vmem:[%s7 + $0x1f8] sm:$0xff]
  %v1898 = vld [vmem:[%s7 + $0x200] sm:$0xff]
  %v1899 = vld [vmem:[%s7 + $0x208] sm:$0xff]
  %v1900 = vld [vmem:[%s7 + $0x210] sm:$0xf]
  %v1901 = vld [vmem:[%s7 + $0x214] sm:$0xff]
  %v1902 = vld [vmem:[%s7 + $0x21c] sm:$0xff]
  %v1903 = vld [vmem:[%s7 + $0x224] sm:$0xff]
  %v1904 = vld [vmem:[%s7 + $0x22c] sm:$0xf]
  %v1905 = vld [vmem:[%s7 + $0x230] sm:$0xff]
  %v1906 = vld [vmem:[%s7 + $0x238] sm:$0xff]
  %v1907 = vld [vmem:[%s7 + $0x240] sm:$0xff]
  %v1908 = vld [vmem:[%s7 + $0x248] sm:$0xf]
  %v1909 = vld [vmem:[%s7 + $0x24c] sm:$0xff]
  %v1910 = vld [vmem:[%s7 + $0x254] sm:$0xff]
  %v1911 = vld [vmem:[%s7 + $0x25c] sm:$0xff]
  %v1912 = vld [vmem:[%s7 + $0x264] sm:$0xf]
  %v1913 = vld [vmem:[%s7 + $0x268] sm:$0xff]
  %v1914 = vld [vmem:[%s7 + $0x270] sm:$0xff]
  %v1915 = vld [vmem:[%s7 + $0x278] sm:$0xff]
  %v1916 = vld [vmem:[%s7 + $0x280] sm:$0xf]
  %v1917 = vld [vmem:[%s7 + $0x284] sm:$0xff]
  %v1918 = vld [vmem:[%s7 + $0x28c] sm:$0xff]
  %v1919 = vld [vmem:[%s7 + $0x294] sm:$0xff]
  %v1920 = vld [vmem:[%s7 + $0x29c] sm:$0xf]
  %v1921 = vld [vmem:[%s7 + $0x2a0] sm:$0xff]
  %v1922 = vld [vmem:[%s7 + $0x2a8] sm:$0xff]
  %v1923 = vld [vmem:[%s7 + $0x2b0] sm:$0xff]
  %v1924 = vld [vmem:[%s7 + $0x2b8] sm:$0xf]
  %v1925 = vld [vmem:[%s7 + $0x2bc] sm:$0xff]
  %v1926 = vld [vmem:[%s7 + $0x2c4] sm:$0xff]
  %v1927 = vld [vmem:[%s7 + $0x2cc] sm:$0xff]
  %v1928 = vld [vmem:[%s7 + $0x2d4] sm:$0xf]
  %v1929 = vld [vmem:[%s7 + $0x2d8] sm:$0xff]
  %v1930 = vld [vmem:[%s7 + $0x2e0] sm:$0xff]
  %v1931 = vld [vmem:[%s7 + $0x2e8] sm:$0xff]
  %v1932 = vld [vmem:[%s7 + $0x2f0] sm:$0xf]
  %v1933 = vld [vmem:[%s7 + $0x2f4] sm:$0xff]
  %v1934 = vld [vmem:[%s7 + $0x2fc] sm:$0xff]
  %v1935 = vld [vmem:[%s7 + $0x304] sm:$0xff]
  %v1936 = vld [vmem:[%s7 + $0x30c] sm:$0xf]
  %v1937 = vld [vmem:[%s7 + $0x310] sm:$0xff]
  %v1938 = vld [vmem:[%s7 + $0x318] sm:$0xff]
  %v1939 = vld [vmem:[%s7 + $0x320] sm:$0xff]
  %v1940 = vld [vmem:[%s7 + $0x328] sm:$0xf]
  %v1941 = vld [vmem:[%s7 + $0x32c] sm:$0xff]
  %v1942 = vld [vmem:[%s7 + $0x334] sm:$0xff]
  %v1943 = vld [vmem:[%s7 + $0x33c] sm:$0xff]
  %v1944 = vld [vmem:[%s7 + $0x344] sm:$0xf]
  %v1945 = vld [vmem:[%s7 + $0x348] sm:$0xff]
  %v1946 = vld [vmem:[%s7 + $0x350] sm:$0xff]
  %v1947 = vld [vmem:[%s7 + $0x358] sm:$0xff]
  %v1948 = vld [vmem:[%s7 + $0x360] sm:$0xf]
  %v1949 = vld [vmem:[%s7 + $0x364] sm:$0xff]
  %v1950 = vld [vmem:[%s7 + $0x36c] sm:$0xff]
  %v1951 = vld [vmem:[%s7 + $0x374] sm:$0xff]
  %v1952 = vld [vmem:[%s7 + $0x37c] sm:$0xf]
  %v1953 = vld [vmem:[%s7 + $0x380] sm:$0xff]
  %v1954 = vld [vmem:[%s7 + $0x388] sm:$0xff]
  %v1955 = vld [vmem:[%s7 + $0x390] sm:$0xff]
  %v1956 = vld [vmem:[%s7 + $0x398] sm:$0xf]
  %v1957 = vld [vmem:[%s7 + $0x39c] sm:$0xff]
  %v1958 = vld [vmem:[%s7 + $0x3a4] sm:$0xff]
  %v1959 = vld [vmem:[%s7 + $0x3ac] sm:$0xff]
  %v1960 = vld [vmem:[%s7 + $0x3b4] sm:$0xf]
  %v1961 = vld [vmem:[%s7 + $0x3b8] sm:$0xff]
  %v1962 = vld [vmem:[%s7 + $0x3c0] sm:$0xff]
  %v1963 = vld [vmem:[%s7 + $0x3c8] sm:$0xff]
  %v1964 = vld [vmem:[%s7 + $0x3d0] sm:$0xf]
  %v1965 = vld [vmem:[%s7 + $0x3d4] sm:$0xff]
  %v1966 = vld [vmem:[%s7 + $0x3dc] sm:$0xff]
  %v1967 = vld [vmem:[%s7 + $0x3e4] sm:$0xff]
  %v1968 = vld [vmem:[%s7 + $0x3ec] sm:$0xf]
  %v1969 = vld [vmem:[%s7 + $0x3f0] sm:$0xff]
  %v1970 = vld [vmem:[%s7 + $0x3f8] sm:$0xff]
  %v1971 = vld [vmem:[%s7 + $0x400] sm:$0xff]
  %v1972 = vld [vmem:[%s7 + $0x408] sm:$0xf]
  %v1973 = vld [vmem:[%s7 + $0x40c] sm:$0x33]
  %v1974 = vld [vmem:[%s7 + $0x414] sm:$0x33]
  %v1975 = vld [vmem:[%s7 + $0x41c] sm:$0x33]
  %v1976 = vld [vmem:[%s7 + $0x424] sm:$0x3]
  %v1977 = vld [vmem:[%s8] sm:$0x7f]
  %v1979 = vlaneseq
  %v1980 = vshrl.u32 %v1979, 7
  %v1981 = vsub.s32 0, %v1980
  %v1982 = vrot.slane %v1977, %v1981
  %v1983 = vlaneseq
  %v1984 = vshrl.u32 %v1983, 7
  %v1985 = vsub.s32 1, %v1984
  %v1986 = vrot.slane %v1977, %v1985
  %v1987 = vlaneseq
  %v1988 = vshrl.u32 %v1987, 7
  %v1989 = vsub.s32 2, %v1988
  %v1990 = vrot.slane %v1977, %v1989
  %v1991 = vlaneseq
  %v1992 = vshrl.u32 %v1991, 7
  %v1993 = vsub.s32 3, %v1992
  %v1994 = vrot.slane %v1977, %v1993
  %v1995 = vlaneseq
  %v1996 = vshrl.u32 %v1995, 7
  %v1997 = vsub.s32 4, %v1996
  %v1998 = vrot.slane %v1977, %v1997
  %v1999 = vlaneseq
  %v2000 = vshrl.u32 %v1999, 7
  %v2001 = vsub.s32 5, %v2000
  %v2002 = vrot.slane %v1977, %v2001
  %v2003 = vlaneseq
  %v2004 = vshrl.u32 %v2003, 7
  %v2005 = vsub.s32 6, %v2004
  %v2006 = vrot.slane %v1977, %v2005
  %v2166 = vunpack.c.l.b16 %v1825
  %v2167 = vunpack.c.h.b16 %v1825
  %v2168 = vunpack.c.l.b16 %v1826
  %v2169 = vunpack.c.h.b16 %v1826
  %v2170 = vunpack.c.l.b16 %v1827
  %v2171 = vunpack.c.h.b16 %v1827
  %v2172 = vunpack.c.l.b16 %v1828
  %v2173 = vunpack.c.l.b16 %v1829
  %v2174 = vunpack.c.h.b16 %v1829
  %v2175 = vunpack.c.l.b16 %v1830
  %v2176 = vunpack.c.h.b16 %v1830
  %v2177 = vunpack.c.l.b16 %v1831
  %v2178 = vunpack.c.h.b16 %v1831
  %v2179 = vunpack.c.l.b16 %v1832
  %v2180 = vunpack.c.l.b16 %v1833
  %v2181 = vunpack.c.h.b16 %v1833
  %v2182 = vunpack.c.l.b16 %v1834
  %v2183 = vunpack.c.h.b16 %v1834
  %v2184 = vunpack.c.l.b16 %v1835
  %v2185 = vunpack.c.h.b16 %v1835
  %v2186 = vunpack.c.l.b16 %v1836
  %v2187 = vunpack.c.l.b16 %v1837
  %v2188 = vunpack.c.h.b16 %v1837
  %v2189 = vunpack.c.l.b16 %v1838
  %v2190 = vunpack.c.h.b16 %v1838
  %v2191 = vunpack.c.l.b16 %v1839
  %v2192 = vunpack.c.h.b16 %v1839
  %v2193 = vunpack.c.l.b16 %v1840
  %v2194 = vunpack.c.l.b16 %v1841
  %v2195 = vunpack.c.h.b16 %v1841
  %v2196 = vunpack.c.l.b16 %v1842
  %v2197 = vunpack.c.h.b16 %v1842
  %v2198 = vunpack.c.l.b16 %v1843
  %v2199 = vunpack.c.h.b16 %v1843
  %v2200 = vunpack.c.l.b16 %v1844
  %v2201 = vunpack.c.l.b16 %v1845
  %v2202 = vunpack.c.h.b16 %v1845
  %v2203 = vunpack.c.l.b16 %v1846
  %v2204 = vunpack.c.h.b16 %v1846
  %v2205 = vunpack.c.l.b16 %v1847
  %v2206 = vunpack.c.h.b16 %v1847
  %v2207 = vunpack.c.l.b16 %v1848
  %v2208 = vunpack.c.l.b16 %v1849
  %v2209 = vunpack.c.h.b16 %v1849
  %v2210 = vunpack.c.l.b16 %v1850
  %v2211 = vunpack.c.h.b16 %v1850
  %v2212 = vunpack.c.l.b16 %v1851
  %v2213 = vunpack.c.h.b16 %v1851
  %v2214 = vunpack.c.l.b16 %v1852
  %v2215 = vunpack.c.l.b16 %v1853
  %v2216 = vunpack.c.h.b16 %v1853
  %v2217 = vunpack.c.l.b16 %v1854
  %v2218 = vunpack.c.h.b16 %v1854
  %v2219 = vunpack.c.l.b16 %v1855
  %v2220 = vunpack.c.h.b16 %v1855
  %v2221 = vunpack.c.l.b16 %v1856
  %v2222 = vunpack.c.l.b16 %v1857
  %v2223 = vunpack.c.h.b16 %v1857
  %v2224 = vunpack.c.l.b16 %v1858
  %v2225 = vunpack.c.h.b16 %v1858
  %v2226 = vunpack.c.l.b16 %v1859
  %v2227 = vunpack.c.h.b16 %v1859
  %v2228 = vunpack.c.l.b16 %v1860
  %v2229 = vunpack.c.l.b16 %v1861
  %v2230 = vunpack.c.h.b16 %v1861
  %v2231 = vunpack.c.l.b16 %v1862
  %v2232 = vunpack.c.h.b16 %v1862
  %v2233 = vunpack.c.l.b16 %v1863
  %v2234 = vunpack.c.h.b16 %v1863
  %v2235 = vunpack.c.l.b16 %v1864
  %v2236 = vunpack.c.l.b16 %v1865
  %v2237 = vunpack.c.h.b16 %v1865
  %v2238 = vunpack.c.l.b16 %v1866
  %v2239 = vunpack.c.h.b16 %v1866
  %v2240 = vunpack.c.l.b16 %v1867
  %v2241 = vunpack.c.h.b16 %v1867
  %v2242 = vunpack.c.l.b16 %v1868
  %v2243 = vunpack.c.l.b16 %v1869
  %v2244 = vunpack.c.h.b16 %v1869
  %v2245 = vunpack.c.l.b16 %v1870
  %v2246 = vunpack.c.h.b16 %v1870
  %v2247 = vunpack.c.l.b16 %v1871
  %v2248 = vunpack.c.h.b16 %v1871
  %v2249 = vunpack.c.l.b16 %v1872
  %v2250 = vunpack.c.l.b16 %v1873
  %v2251 = vunpack.c.h.b16 %v1873
  %v2252 = vunpack.c.l.b16 %v1874
  %v2253 = vunpack.c.h.b16 %v1874
  %v2254 = vunpack.c.l.b16 %v1875
  %v2255 = vunpack.c.h.b16 %v1875
  %v2256 = vunpack.c.l.b16 %v1876
  %v2257 = vunpack.c.l.b16 %v1877
  %v2258 = vunpack.c.h.b16 %v1877
  %v2259 = vunpack.c.l.b16 %v1878
  %v2260 = vunpack.c.h.b16 %v1878
  %v2261 = vunpack.c.l.b16 %v1879
  %v2262 = vunpack.c.h.b16 %v1879
  %v2263 = vunpack.c.l.b16 %v1880
  %v2264 = vunpack.c.l.b16 %v1881
  %v2265 = vunpack.c.h.b16 %v1881
  %v2266 = vunpack.c.l.b16 %v1882
  %v2267 = vunpack.c.h.b16 %v1882
  %v2268 = vunpack.c.l.b16 %v1883
  %v2269 = vunpack.c.h.b16 %v1883
  %v2270 = vunpack.c.l.b16 %v1884
  %v2271 = vunpack.c.l.b16 %v1885
  %v2272 = vunpack.c.h.b16 %v1885
  %v2273 = vunpack.c.l.b16 %v1886
  %v2274 = vunpack.c.h.b16 %v1886
  %v2275 = vunpack.c.l.b16 %v1887
  %v2276 = vunpack.c.h.b16 %v1887
  %v2277 = vunpack.c.l.b16 %v1888
  %v2278 = vunpack.c.l.b16 %v1889
  %v2279 = vunpack.c.h.b16 %v1889
  %v2280 = vunpack.c.l.b16 %v1890
  %v2281 = vunpack.c.h.b16 %v1890
  %v2282 = vunpack.c.l.b16 %v1891
  %v2283 = vunpack.c.h.b16 %v1891
  %v2284 = vunpack.c.l.b16 %v1892
  %v2285 = vunpack.c.l.b16 %v1893
  %v2286 = vunpack.c.h.b16 %v1893
  %v2287 = vunpack.c.l.b16 %v1894
  %v2288 = vunpack.c.h.b16 %v1894
  %v2289 = vunpack.c.l.b16 %v1895
  %v2290 = vunpack.c.h.b16 %v1895
  %v2291 = vunpack.c.l.b16 %v1896
  %v2292 = vunpack.c.l.b16 %v1897
  %v2293 = vunpack.c.h.b16 %v1897
  %v2294 = vunpack.c.l.b16 %v1898
  %v2295 = vunpack.c.h.b16 %v1898
  %v2296 = vunpack.c.l.b16 %v1899
  %v2297 = vunpack.c.h.b16 %v1899
  %v2298 = vunpack.c.l.b16 %v1900
  %v2299 = vunpack.c.l.b16 %v1901
  %v2300 = vunpack.c.h.b16 %v1901
  %v2301 = vunpack.c.l.b16 %v1902
  %v2302 = vunpack.c.h.b16 %v1902
  %v2303 = vunpack.c.l.b16 %v1903
  %v2304 = vunpack.c.h.b16 %v1903
  %v2305 = vunpack.c.l.b16 %v1904
  %v2306 = vunpack.c.l.b16 %v1905
  %v2307 = vunpack.c.h.b16 %v1905
  %v2308 = vunpack.c.l.b16 %v1906
  %v2309 = vunpack.c.h.b16 %v1906
  %v2310 = vunpack.c.l.b16 %v1907
  %v2311 = vunpack.c.h.b16 %v1907
  %v2312 = vunpack.c.l.b16 %v1908
  %v2313 = vunpack.c.l.b16 %v1909
  %v2314 = vunpack.c.h.b16 %v1909
  %v2315 = vunpack.c.l.b16 %v1910
  %v2316 = vunpack.c.h.b16 %v1910
  %v2317 = vunpack.c.l.b16 %v1911
  %v2318 = vunpack.c.h.b16 %v1911
  %v2319 = vunpack.c.l.b16 %v1912
  %v2320 = vunpack.c.l.b16 %v1913
  %v2321 = vunpack.c.h.b16 %v1913
  %v2322 = vunpack.c.l.b16 %v1914
  %v2323 = vunpack.c.h.b16 %v1914
  %v2324 = vunpack.c.l.b16 %v1915
  %v2325 = vunpack.c.h.b16 %v1915
  %v2326 = vunpack.c.l.b16 %v1916
  %v2327 = vunpack.c.l.b16 %v1917
  %v2328 = vunpack.c.h.b16 %v1917
  %v2329 = vunpack.c.l.b16 %v1918
  %v2330 = vunpack.c.h.b16 %v1918
  %v2331 = vunpack.c.l.b16 %v1919
  %v2332 = vunpack.c.h.b16 %v1919
  %v2333 = vunpack.c.l.b16 %v1920
  %v2334 = vunpack.c.l.b16 %v1921
  %v2335 = vunpack.c.h.b16 %v1921
  %v2336 = vunpack.c.l.b16 %v1922
  %v2337 = vunpack.c.h.b16 %v1922
  %v2338 = vunpack.c.l.b16 %v1923
  %v2339 = vunpack.c.h.b16 %v1923
  %v2340 = vunpack.c.l.b16 %v1924
  %v2341 = vunpack.c.l.b16 %v1925
  %v2342 = vunpack.c.h.b16 %v1925
  %v2343 = vunpack.c.l.b16 %v1926
  %v2344 = vunpack.c.h.b16 %v1926
  %v2345 = vunpack.c.l.b16 %v1927
  %v2346 = vunpack.c.h.b16 %v1927
  %v2347 = vunpack.c.l.b16 %v1928
  %v2348 = vunpack.c.l.b16 %v1929
  %v2349 = vunpack.c.h.b16 %v1929
  %v2350 = vunpack.c.l.b16 %v1930
  %v2351 = vunpack.c.h.b16 %v1930
  %v2352 = vunpack.c.l.b16 %v1931
  %v2353 = vunpack.c.h.b16 %v1931
  %v2354 = vunpack.c.l.b16 %v1932
  %v2355 = vunpack.c.l.b16 %v1933
  %v2356 = vunpack.c.h.b16 %v1933
  %v2357 = vunpack.c.l.b16 %v1934
  %v2358 = vunpack.c.h.b16 %v1934
  %v2359 = vunpack.c.l.b16 %v1935
  %v2360 = vunpack.c.h.b16 %v1935
  %v2361 = vunpack.c.l.b16 %v1936
  %v2362 = vunpack.c.l.b16 %v1937
  %v2363 = vunpack.c.h.b16 %v1937
  %v2364 = vunpack.c.l.b16 %v1938
  %v2365 = vunpack.c.h.b16 %v1938
  %v2366 = vunpack.c.l.b16 %v1939
  %v2367 = vunpack.c.h.b16 %v1939
  %v2368 = vunpack.c.l.b16 %v1940
  %v2369 = vunpack.c.l.b16 %v1941
  %v2370 = vunpack.c.h.b16 %v1941
  %v2371 = vunpack.c.l.b16 %v1942
  %v2372 = vunpack.c.h.b16 %v1942
  %v2373 = vunpack.c.l.b16 %v1943
  %v2374 = vunpack.c.h.b16 %v1943
  %v2375 = vunpack.c.l.b16 %v1944
  %v2376 = vunpack.c.l.b16 %v1945
  %v2377 = vunpack.c.h.b16 %v1945
  %v2378 = vunpack.c.l.b16 %v1946
  %v2379 = vunpack.c.h.b16 %v1946
  %v2380 = vunpack.c.l.b16 %v1947
  %v2381 = vunpack.c.h.b16 %v1947
  %v2382 = vunpack.c.l.b16 %v1948
  %v2383 = vunpack.c.l.b16 %v1949
  %v2384 = vunpack.c.h.b16 %v1949
  %v2385 = vunpack.c.l.b16 %v1950
  %v2386 = vunpack.c.h.b16 %v1950
  %v2387 = vunpack.c.l.b16 %v1951
  %v2388 = vunpack.c.h.b16 %v1951
  %v2389 = vunpack.c.l.b16 %v1952
  %v2390 = vunpack.c.l.b16 %v1953
  %v2391 = vunpack.c.h.b16 %v1953
  %v2392 = vunpack.c.l.b16 %v1954
  %v2393 = vunpack.c.h.b16 %v1954
  %v2394 = vunpack.c.l.b16 %v1955
  %v2395 = vunpack.c.h.b16 %v1955
  %v2396 = vunpack.c.l.b16 %v1956
  %v2397 = vunpack.c.l.b16 %v1957
  %v2398 = vunpack.c.h.b16 %v1957
  %v2399 = vunpack.c.l.b16 %v1958
  %v2400 = vunpack.c.h.b16 %v1958
  %v2401 = vunpack.c.l.b16 %v1959
  %v2402 = vunpack.c.h.b16 %v1959
  %v2403 = vunpack.c.l.b16 %v1960
  %v2404 = vunpack.c.l.b16 %v1961
  %v2405 = vunpack.c.h.b16 %v1961
  %v2406 = vunpack.c.l.b16 %v1962
  %v2407 = vunpack.c.h.b16 %v1962
  %v2408 = vunpack.c.l.b16 %v1963
  %v2409 = vunpack.c.h.b16 %v1963
  %v2410 = vunpack.c.l.b16 %v1964
  %v2411 = vunpack.c.l.b16 %v1965
  %v2412 = vunpack.c.h.b16 %v1965
  %v2413 = vunpack.c.l.b16 %v1966
  %v2414 = vunpack.c.h.b16 %v1966
  %v2415 = vunpack.c.l.b16 %v1967
  %v2416 = vunpack.c.h.b16 %v1967
  %v2417 = vunpack.c.l.b16 %v1968
  %v2418 = vunpack.c.l.b16 %v1969
  %v2419 = vunpack.c.h.b16 %v1969
  %v2420 = vunpack.c.l.b16 %v1970
  %v2421 = vunpack.c.h.b16 %v1970
  %v2422 = vunpack.c.l.b16 %v1971
  %v2423 = vunpack.c.h.b16 %v1971
  %v2424 = vunpack.c.l.b16 %v1972
  %v2425 = vunpack.c.l.b16 %v1973
  %v2426 = vunpack.c.h.b16 %v1973
  %v2427 = vunpack.c.l.b16 %v1974
  %v2428 = vunpack.c.h.b16 %v1974
  %v2429 = vunpack.c.l.b16 %v1975
  %v2430 = vunpack.c.h.b16 %v1975
  %v2431 = vunpack.c.l.b16 %v1976
  %v2432 = vpack.c.b16 %v2173, %v2166
  %v2433 = vpack.c.b16 %v2174, %v2167
  %v2434 = vpack.c.b16 %v2175, %v2168
  %v2435 = vpack.c.b16 %v2176, %v2169
  %v2436 = vpack.c.b16 %v2177, %v2170
  %v2437 = vpack.c.b16 %v2178, %v2171
  %v2438 = vpack.c.b16 %v2179, %v2172
  %v2439 = vpack.c.b16 %v2187, %v2180
  %v2440 = vpack.c.b16 %v2188, %v2181
  %v2441 = vpack.c.b16 %v2189, %v2182
  %v2442 = vpack.c.b16 %v2190, %v2183
  %v2443 = vpack.c.b16 %v2191, %v2184
  %v2444 = vpack.c.b16 %v2192, %v2185
  %v2445 = vpack.c.b16 %v2193, %v2186
  %v2446 = vpack.c.b16 %v2201, %v2194
  %v2447 = vpack.c.b16 %v2202, %v2195
  %v2448 = vpack.c.b16 %v2203, %v2196
  %v2449 = vpack.c.b16 %v2204, %v2197
  %v2450 = vpack.c.b16 %v2205, %v2198
  %v2451 = vpack.c.b16 %v2206, %v2199
  %v2452 = vpack.c.b16 %v2207, %v2200
  %v2453 = vpack.c.b16 %v2215, %v2208
  %v2454 = vpack.c.b16 %v2216, %v2209
  %v2455 = vpack.c.b16 %v2217, %v2210
  %v2456 = vpack.c.b16 %v2218, %v2211
  %v2457 = vpack.c.b16 %v2219, %v2212
  %v2458 = vpack.c.b16 %v2220, %v2213
  %v2459 = vpack.c.b16 %v2221, %v2214
  %v2460 = vpack.c.b16 %v2229, %v2222
  %v2461 = vpack.c.b16 %v2230, %v2223
  %v2462 = vpack.c.b16 %v2231, %v2224
  %v2463 = vpack.c.b16 %v2232, %v2225
  %v2464 = vpack.c.b16 %v2233, %v2226
  %v2465 = vpack.c.b16 %v2234, %v2227
  %v2466 = vpack.c.b16 %v2235, %v2228
  %v2467 = vpack.c.b16 %v2243, %v2236
  %v2468 = vpack.c.b16 %v2244, %v2237
  %v2469 = vpack.c.b16 %v2245, %v2238
  %v2470 = vpack.c.b16 %v2246, %v2239
  %v2471 = vpack.c.b16 %v2247, %v2240
  %v2472 = vpack.c.b16 %v2248, %v2241
  %v2473 = vpack.c.b16 %v2249, %v2242
  %v2474 = vpack.c.b16 %v2257, %v2250
  %v2475 = vpack.c.b16 %v2258, %v2251
  %v2476 = vpack.c.b16 %v2259, %v2252
  %v2477 = vpack.c.b16 %v2260, %v2253
  %v2478 = vpack.c.b16 %v2261, %v2254
  %v2479 = vpack.c.b16 %v2262, %v2255
  %v2480 = vpack.c.b16 %v2263, %v2256
  %v2481 = vpack.c.b16 %v2271, %v2264
  %v2482 = vpack.c.b16 %v2272, %v2265
  %v2483 = vpack.c.b16 %v2273, %v2266
  %v2484 = vpack.c.b16 %v2274, %v2267
  %v2485 = vpack.c.b16 %v2275, %v2268
  %v2486 = vpack.c.b16 %v2276, %v2269
  %v2487 = vpack.c.b16 %v2277, %v2270
  %v2488 = vpack.c.b16 %v2285, %v2278
  %v2489 = vpack.c.b16 %v2286, %v2279
  %v2490 = vpack.c.b16 %v2287, %v2280
  %v2491 = vpack.c.b16 %v2288, %v2281
  %v2492 = vpack.c.b16 %v2289, %v2282
  %v2493 = vpack.c.b16 %v2290, %v2283
  %v2494 = vpack.c.b16 %v2291, %v2284
  %v2495 = vpack.c.b16 %v2299, %v2292
  %v2496 = vpack.c.b16 %v2300, %v2293
  %v2497 = vpack.c.b16 %v2301, %v2294
  %v2498 = vpack.c.b16 %v2302, %v2295
  %v2499 = vpack.c.b16 %v2303, %v2296
  %v2500 = vpack.c.b16 %v2304, %v2297
  %v2501 = vpack.c.b16 %v2305, %v2298
  %v2502 = vpack.c.b16 %v2313, %v2306
  %v2503 = vpack.c.b16 %v2314, %v2307
  %v2504 = vpack.c.b16 %v2315, %v2308
  %v2505 = vpack.c.b16 %v2316, %v2309
  %v2506 = vpack.c.b16 %v2317, %v2310
  %v2507 = vpack.c.b16 %v2318, %v2311
  %v2508 = vpack.c.b16 %v2319, %v2312
  %v2509 = vpack.c.b16 %v2327, %v2320
  %v2510 = vpack.c.b16 %v2328, %v2321
  %v2511 = vpack.c.b16 %v2329, %v2322
  %v2512 = vpack.c.b16 %v2330, %v2323
  %v2513 = vpack.c.b16 %v2331, %v2324
  %v2514 = vpack.c.b16 %v2332, %v2325
  %v2515 = vpack.c.b16 %v2333, %v2326
  %v2516 = vpack.c.b16 %v2341, %v2334
  %v2517 = vpack.c.b16 %v2342, %v2335
  %v2518 = vpack.c.b16 %v2343, %v2336
  %v2519 = vpack.c.b16 %v2344, %v2337
  %v2520 = vpack.c.b16 %v2345, %v2338
  %v2521 = vpack.c.b16 %v2346, %v2339
  %v2522 = vpack.c.b16 %v2347, %v2340
  %v2523 = vpack.c.b16 %v2355, %v2348
  %v2524 = vpack.c.b16 %v2356, %v2349
  %v2525 = vpack.c.b16 %v2357, %v2350
  %v2526 = vpack.c.b16 %v2358, %v2351
  %v2527 = vpack.c.b16 %v2359, %v2352
  %v2528 = vpack.c.b16 %v2360, %v2353
  %v2529 = vpack.c.b16 %v2361, %v2354
  %v2530 = vpack.c.b16 %v2369, %v2362
  %v2531 = vpack.c.b16 %v2370, %v2363
  %v2532 = vpack.c.b16 %v2371, %v2364
  %v2533 = vpack.c.b16 %v2372, %v2365
  %v2534 = vpack.c.b16 %v2373, %v2366
  %v2535 = vpack.c.b16 %v2374, %v2367
  %v2536 = vpack.c.b16 %v2375, %v2368
  %v2537 = vpack.c.b16 %v2383, %v2376
  %v2538 = vpack.c.b16 %v2384, %v2377
  %v2539 = vpack.c.b16 %v2385, %v2378
  %v2540 = vpack.c.b16 %v2386, %v2379
  %v2541 = vpack.c.b16 %v2387, %v2380
  %v2542 = vpack.c.b16 %v2388, %v2381
  %v2543 = vpack.c.b16 %v2389, %v2382
  %v2544 = vpack.c.b16 %v2397, %v2390
  %v2545 = vpack.c.b16 %v2398, %v2391
  %v2546 = vpack.c.b16 %v2399, %v2392
  %v2547 = vpack.c.b16 %v2400, %v2393
  %v2548 = vpack.c.b16 %v2401, %v2394
  %v2549 = vpack.c.b16 %v2402, %v2395
  %v2550 = vpack.c.b16 %v2403, %v2396
  %v2551 = vpack.c.b16 %v2411, %v2404
  %v2552 = vpack.c.b16 %v2412, %v2405
  %v2553 = vpack.c.b16 %v2413, %v2406
  %v2554 = vpack.c.b16 %v2414, %v2407
  %v2555 = vpack.c.b16 %v2415, %v2408
  %v2556 = vpack.c.b16 %v2416, %v2409
  %v2557 = vpack.c.b16 %v2417, %v2410
  %v2558 = vpack.c.b16 %v2425, %v2418
  %v2559 = vpack.c.b16 %v2426, %v2419
  %v2560 = vpack.c.b16 %v2427, %v2420
  %v2561 = vpack.c.b16 %v2428, %v2421
  %v2562 = vpack.c.b16 %v2429, %v2422
  %v2563 = vpack.c.b16 %v2430, %v2423
  %v2564 = vpack.c.b16 %v2431, %v2424
  %v2692 = vsel %vm1490, %v1824, 0
  %vm2694 = vcmask 1045504
  %v2696 = vsel %vm2694, %v2558, 0
  %v2699 = vsel %vm2694, %v2559, 0
  %v2702 = vsel %vm2694, %v2560, 0
  %v2705 = vsel %vm2694, %v2561, 0
  %v2708 = vsel %vm2694, %v2562, 0
  %v2711 = vsel %vm2694, %v2563, 0
  %v2714 = vsel %vm2694, %v2564, 0
  %2716 = vmatprep.subr.bf16.mxu0 %v2433
  %2717 = vmatpush1.bf16.msra.mxu0 %v2432
  %2718 = vmatprep.subr.bf16.mxu0 %v2440
  %2719 = vmatpush1.bf16.msra.mxu0 %v2439
  %2720 = vmatprep.subr.bf16.mxu0 %v2447
  %2721 = vmatpush1.bf16.msra.mxu0 %v2446
  %2722 = vmatprep.subr.bf16.mxu0 %v2454
  %2723 = vmatpush1.bf16.msra.mxu0 %v2453
  %2724 = vmatprep.subr.bf16.mxu0 %v2461
  %2725 = vmatpush1.bf16.msra.mxu0 %v2460
  %2726 = vmatprep.subr.bf16.mxu0 %v2468
  %2727 = vmatpush1.bf16.msra.mxu0 %v2467
  %2728 = vmatprep.subr.bf16.mxu0 %v2475
  %2729 = vmatpush1.bf16.msra.mxu0 %v2474
  %2730 = vmatprep.subr.bf16.mxu0 %v2482
  %2731 = vmatpush1.bf16.msra.mxu0 %v2481
  %2732 = vmatprep.subr.bf16.mxu0 %v2489
  %2733 = vmatpush1.bf16.msra.mxu0 %v2488
  %2734 = vmatprep.subr.bf16.mxu0 %v2496
  %2735 = vmatpush1.bf16.msra.mxu0 %v2495
  %2736 = vmatprep.subr.bf16.mxu0 %v2503
  %2737 = vmatpush1.bf16.msra.mxu0 %v2502
  %2738 = vmatprep.subr.bf16.mxu0 %v2510
  %2739 = vmatpush1.bf16.msra.mxu0 %v2509
  %2740 = vmatprep.subr.bf16.mxu0 %v2517
  %2741 = vmatpush1.bf16.msra.mxu0 %v2516
  %2742 = vmatprep.subr.bf16.mxu0 %v2524
  %2743 = vmatpush1.bf16.msra.mxu0 %v2523
  %2744 = vmatprep.subr.bf16.mxu0 %v2531
  %2745 = vmatpush1.bf16.msra.mxu0 %v2530
  %2746 = vmatprep.subr.bf16.mxu0 %v2538
  %2747 = vmatpush1.bf16.msra.mxu0 %v2537
  %2748 = vmatprep.mubr.bf16.mxu0 %v1823
  %2749 = vmatmul.mubr.bf16.gmra.mrb[0].mxu0 %v1822
  %v2750 = vpop.f32.mrb[0].mxu0
  %v2751 = vadd.f32 %v1982, %v2750
  %v2752 = vpop.f32.mrb[0].mxu0
  %v2753 = vadd.f32 %v1986, %v2752
  %v2754 = vpop.f32.mrb[0].mxu0
  %v2755 = vadd.f32 %v1982, %v2754
  %v2756 = vpop.f32.mrb[0].mxu0
  %v2757 = vadd.f32 %v1986, %v2756
  %2758 = vdwg.mxu0
  %2759 = vmatprep.subr.bf16.mxu0 %v2545
  %2760 = vmatpush1.bf16.msra.mxu0 %v2544
  %2761 = vmatprep.subr.bf16.mxu0 %v2552
  %2762 = vmatpush1.bf16.msra.mxu0 %v2551
  %2763 = vmatprep.subr.bf16.mxu0 %v2699
  %2764 = vmatpush1.bf16.msra.mxu0 %v2696
  %2765 = vmatprep.subr.bf16.mxu0 0
  %2766 = vmatpush1.bf16.msra.mxu0 0
  %2767 = vmatprep.subr.bf16.mxu0 0
  %2768 = vmatpush1.bf16.msra.mxu0 0
  %2769 = vmatprep.subr.bf16.mxu0 0
  %2770 = vmatpush1.bf16.msra.mxu0 0
  %2771 = vmatprep.subr.bf16.mxu0 0
  %2772 = vmatpush1.bf16.msra.mxu0 0
  %2773 = vmatprep.subr.bf16.mxu0 0
  %2774 = vmatpush1.bf16.msra.mxu0 0
  %2775 = vmatprep.subr.bf16.mxu0 0
  %2776 = vmatpush1.bf16.msra.mxu0 0
  %2777 = vmatprep.subr.bf16.mxu0 0
  %2778 = vmatpush1.bf16.msra.mxu0 0
  %2779 = vmatprep.subr.bf16.mxu0 0
  %2780 = vmatpush1.bf16.msra.mxu0 0
  %2781 = vmatprep.subr.bf16.mxu0 0
  %2782 = vmatpush1.bf16.msra.mxu0 0
  %2783 = vmatprep.subr.bf16.mxu0 0
  %2784 = vmatpush1.bf16.msra.mxu0 0
  %2785 = vmatprep.subr.bf16.mxu0 0
  %2786 = vmatpush1.bf16.msra.mxu0 0
  %2787 = vmatprep.subr.bf16.mxu0 0
  %2788 = vmatpush1.bf16.msra.mxu0 0
  %2789 = vmatprep.subr.bf16.mxu0 0
  %2790 = vmatpush1.bf16.msra.mxu0 0
  %2791 = vmatprep.mubr.bf16.mxu0 0
  %2792 = vmatmul.mubr.bf16.gmra.mrb[0].mxu0 %v2692
  %v2793 = vpop.f32.mrb[0].mxu0
  %v2794 = vadd.f32 %v2751, %v2793
  %v2795 = vpop.f32.mrb[0].mxu0
  %v2796 = vadd.f32 %v2753, %v2795
  %v2797 = vpop.f32.mrb[0].mxu0
  %v2798 = vadd.f32 %v2755, %v2797
  %v2799 = vpop.f32.mrb[0].mxu0
  %v2800 = vadd.f32 %v2757, %v2799
  %2801 = vdwg.mxu0
  %2802 = vmatprep.subr.bf16.mxu0 %v2435
  %2803 = vmatpush1.bf16.msra.mxu0 %v2434
  %2804 = vmatprep.subr.bf16.mxu0 %v2442
  %2805 = vmatpush1.bf16.msra.mxu0 %v2441
  %2806 = vmatprep.subr.bf16.mxu0 %v2449
  %2807 = vmatpush1.bf16.msra.mxu0 %v2448
  %2808 = vmatprep.subr.bf16.mxu0 %v2456
  %2809 = vmatpush1.bf16.msra.mxu0 %v2455
  %2810 = vmatprep.subr.bf16.mxu0 %v2463
  %2811 = vmatpush1.bf16.msra.mxu0 %v2462
  %2812 = vmatprep.subr.bf16.mxu0 %v2470
  %2813 = vmatpush1.bf16.msra.mxu0 %v2469
  %2814 = vmatprep.subr.bf16.mxu0 %v2477
  %2815 = vmatpush1.bf16.msra.mxu0 %v2476
  %2816 = vmatprep.subr.bf16.mxu0 %v2484
  %2817 = vmatpush1.bf16.msra.mxu0 %v2483
  %2818 = vmatprep.subr.bf16.mxu0 %v2491
  %2819 = vmatpush1.bf16.msra.mxu0 %v2490
  %2820 = vmatprep.subr.bf16.mxu0 %v2498
  %2821 = vmatpush1.bf16.msra.mxu0 %v2497
  %2822 = vmatprep.subr.bf16.mxu0 %v2505
  %2823 = vmatpush1.bf16.msra.mxu0 %v2504
  %2824 = vmatprep.subr.bf16.mxu0 %v2512
  %2825 = vmatpush1.bf16.msra.mxu0 %v2511
  %2826 = vmatprep.subr.bf16.mxu0 %v2519
  %2827 = vmatpush1.bf16.msra.mxu0 %v2518
  %2828 = vmatprep.subr.bf16.mxu0 %v2526
  %2829 = vmatpush1.bf16.msra.mxu0 %v2525
  %2830 = vmatprep.subr.bf16.mxu0 %v2533
  %2831 = vmatpush1.bf16.msra.mxu0 %v2532
  %2832 = vmatprep.subr.bf16.mxu0 %v2540
  %2833 = vmatpush1.bf16.msra.mxu0 %v2539
  %2834 = vmatprep.mubr.bf16.mxu0 %v1823
  %2835 = vmatmul.mubr.bf16.gmra.mrb[0].mxu0 %v1822
  %v2836 = vpop.f32.mrb[0].mxu0
  %v2837 = vadd.f32 %v1990, %v2836
  %v2838 = vpop.f32.mrb[0].mxu0
  %v2839 = vadd.f32 %v1994, %v2838
  %v2840 = vpop.f32.mrb[0].mxu0
  %v2841 = vadd.f32 %v1990, %v2840
  %v2842 = vpop.f32.mrb[0].mxu0
  %v2843 = vadd.f32 %v1994, %v2842
  %2844 = vdwg.mxu0
  %2845 = vmatprep.subr.bf16.mxu0 %v2547
  %2846 = vmatpush1.bf16.msra.mxu0 %v2546
  %2847 = vmatprep.subr.bf16.mxu0 %v2554
  %2848 = vmatpush1.bf16.msra.mxu0 %v2553
  %2849 = vmatprep.subr.bf16.mxu0 %v2705
  %2850 = vmatpush1.bf16.msra.mxu0 %v2702
  %2851 = vmatprep.subr.bf16.mxu0 0
  %2852 = vmatpush1.bf16.msra.mxu0 0
  %2853 = vmatprep.subr.bf16.mxu0 0
  %2854 = vmatpush1.bf16.msra.mxu0 0
  %2855 = vmatprep.subr.bf16.mxu0 0
  %2856 = vmatpush1.bf16.msra.mxu0 0
  %2857 = vmatprep.subr.bf16.mxu0 0
  %2858 = vmatpush1.bf16.msra.mxu0 0
  %2859 = vmatprep.subr.bf16.mxu0 0
  %2860 = vmatpush1.bf16.msra.mxu0 0
  %2861 = vmatprep.subr.bf16.mxu0 0
  %2862 = vmatpush1.bf16.msra.mxu0 0
  %2863 = vmatprep.subr.bf16.mxu0 0
  %2864 = vmatpush1.bf16.msra.mxu0 0
  %2865 = vmatprep.subr.bf16.mxu0 0
  %2866 = vmatpush1.bf16.msra.mxu0 0
  %2867 = vmatprep.subr.bf16.mxu0 0
  %2868 = vmatpush1.bf16.msra.mxu0 0
  %2869 = vmatprep.subr.bf16.mxu0 0
  %2870 = vmatpush1.bf16.msra.mxu0 0
  %2871 = vmatprep.subr.bf16.mxu0 0
  %2872 = vmatpush1.bf16.msra.mxu0 0
  %2873 = vmatprep.subr.bf16.mxu0 0
  %2874 = vmatpush1.bf16.msra.mxu0 0
  %2875 = vmatprep.subr.bf16.mxu0 0
  %2876 = vmatpush1.bf16.msra.mxu0 0
  %2877 = vmatprep.mubr.bf16.mxu0 0
  %2878 = vmatmul.mubr.bf16.gmra.mrb[0].mxu0 %v2692
  %v2879 = vpop.f32.mrb[0].mxu0
  %v2880 = vadd.f32 %v2837, %v2879
  %v2881 = vpop.f32.mrb[0].mxu0
  %v2882 = vadd.f32 %v2839, %v2881
  %v2883 = vpop.f32.mrb[0].mxu0
  %v2884 = vadd.f32 %v2841, %v2883
  %v2885 = vpop.f32.mrb[0].mxu0
  %v2886 = vadd.f32 %v2843, %v2885
  %2887 = vdwg.mxu0
  %2888 = vmatprep.subr.bf16.mxu0 %v2437
  %2889 = vmatpush1.bf16.msra.mxu0 %v2436
  %2890 = vmatprep.subr.bf16.mxu0 %v2444
  %2891 = vmatpush1.bf16.msra.mxu0 %v2443
  %2892 = vmatprep.subr.bf16.mxu0 %v2451
  %2893 = vmatpush1.bf16.msra.mxu0 %v2450
  %2894 = vmatprep.subr.bf16.mxu0 %v2458
  %2895 = vmatpush1.bf16.msra.mxu0 %v2457
  %2896 = vmatprep.subr.bf16.mxu0 %v2465
  %2897 = vmatpush1.bf16.msra.mxu0 %v2464
  %2898 = vmatprep.subr.bf16.mxu0 %v2472
  %2899 = vmatpush1.bf16.msra.mxu0 %v2471
  %2900 = vmatprep.subr.bf16.mxu0 %v2479
  %2901 = vmatpush1.bf16.msra.mxu0 %v2478
  %2902 = vmatprep.subr.bf16.mxu0 %v2486
  %2903 = vmatpush1.bf16.msra.mxu0 %v2485
  %2904 = vmatprep.subr.bf16.mxu0 %v2493
  %2905 = vmatpush1.bf16.msra.mxu0 %v2492
  %2906 = vmatprep.subr.bf16.mxu0 %v2500
  %2907 = vmatpush1.bf16.msra.mxu0 %v2499
  %2908 = vmatprep.subr.bf16.mxu0 %v2507
  %2909 = vmatpush1.bf16.msra.mxu0 %v2506
  %2910 = vmatprep.subr.bf16.mxu0 %v2514
  %2911 = vmatpush1.bf16.msra.mxu0 %v2513
  %2912 = vmatprep.subr.bf16.mxu0 %v2521
  %2913 = vmatpush1.bf16.msra.mxu0 %v2520
  %2914 = vmatprep.subr.bf16.mxu0 %v2528
  %2915 = vmatpush1.bf16.msra.mxu0 %v2527
  %2916 = vmatprep.subr.bf16.mxu0 %v2535
  %2917 = vmatpush1.bf16.msra.mxu0 %v2534
  %2918 = vmatprep.subr.bf16.mxu0 %v2542
  %2919 = vmatpush1.bf16.msra.mxu0 %v2541
  %2920 = vmatprep.mubr.bf16.mxu0 %v1823
  %2921 = vmatmul.mubr.bf16.gmra.mrb[0].mxu0 %v1822
  %v2922 = vpop.f32.mrb[0].mxu0
  %v2923 = vadd.f32 %v1998, %v2922
  %v2924 = vpop.f32.mrb[0].mxu0
  %v2925 = vadd.f32 %v2002, %v2924
  %v2926 = vpop.f32.mrb[0].mxu0
  %v2927 = vadd.f32 %v1998, %v2926
  %v2928 = vpop.f32.mrb[0].mxu0
  %v2929 = vadd.f32 %v2002, %v2928
  %2930 = vdwg.mxu0
  %2931 = vmatprep.subr.bf16.mxu0 %v2549
  %2932 = vmatpush1.bf16.msra.mxu0 %v2548
  %2933 = vmatprep.subr.bf16.mxu0 %v2556
  %2934 = vmatpush1.bf16.msra.mxu0 %v2555
  %2935 = vmatprep.subr.bf16.mxu0 %v2711
  %2936 = vmatpush1.bf16.msra.mxu0 %v2708
  %2937 = vmatprep.subr.bf16.mxu0 0
  %2938 = vmatpush1.bf16.msra.mxu0 0
  %2939 = vmatprep.subr.bf16.mxu0 0
  %2940 = vmatpush1.bf16.msra.mxu0 0
  %2941 = vmatprep.subr.bf16.mxu0 0
  %2942 = vmatpush1.bf16.msra.mxu0 0
  %2943 = vmatprep.subr.bf16.mxu0 0
  %2944 = vmatpush1.bf16.msra.mxu0 0
  %2945 = vmatprep.subr.bf16.mxu0 0
  %2946 = vmatpush1.bf16.msra.mxu0 0
  %2947 = vmatprep.subr.bf16.mxu0 0
  %2948 = vmatpush1.bf16.msra.mxu0 0
  %2949 = vmatprep.subr.bf16.mxu0 0
  %2950 = vmatpush1.bf16.msra.mxu0 0
  %2951 = vmatprep.subr.bf16.mxu0 0
  %2952 = vmatpush1.bf16.msra.mxu0 0
  %2953 = vmatprep.subr.bf16.mxu0 0
  %2954 = vmatpush1.bf16.msra.mxu0 0
  %2955 = vmatprep.subr.bf16.mxu0 0
  %2956 = vmatpush1.bf16.msra.mxu0 0
  %2957 = vmatprep.subr.bf16.mxu0 0
  %2958 = vmatpush1.bf16.msra.mxu0 0
  %2959 = vmatprep.subr.bf16.mxu0 0
  %2960 = vmatpush1.bf16.msra.mxu0 0
  %2961 = vmatprep.subr.bf16.mxu0 0
  %2962 = vmatpush1.bf16.msra.mxu0 0
  %2963 = vmatprep.mubr.bf16.mxu0 0
  %2964 = vmatmul.mubr.bf16.gmra.mrb[0].mxu0 %v2692
  %v2965 = vpop.f32.mrb[0].mxu0
  %v2966 = vadd.f32 %v2923, %v2965
  %v2967 = vpop.f32.mrb[0].mxu0
  %v2968 = vadd.f32 %v2925, %v2967
  %v2969 = vpop.f32.mrb[0].mxu0
  %v2970 = vadd.f32 %v2927, %v2969
  %v2971 = vpop.f32.mrb[0].mxu0
  %v2972 = vadd.f32 %v2929, %v2971
  %2973 = vdwg.mxu0
  %2974 = vmatprep.subr.bf16.mxu0 0
  %2975 = vmatpush1.bf16.msra.mxu0 %v2438
  %2976 = vmatprep.subr.bf16.mxu0 0
  %2977 = vmatpush1.bf16.msra.mxu0 %v2445
  %2978 = vmatprep.subr.bf16.mxu0 0
  %2979 = vmatpush1.bf16.msra.mxu0 %v2452
  %2980 = vmatprep.subr.bf16.mxu0 0
  %2981 = vmatpush1.bf16.msra.mxu0 %v2459
  %2982 = vmatprep.subr.bf16.mxu0 0
  %2983 = vmatpush1.bf16.msra.mxu0 %v2466
  %2984 = vmatprep.subr.bf16.mxu0 0
  %2985 = vmatpush1.bf16.msra.mxu0 %v2473
  %2986 = vmatprep.subr.bf16.mxu0 0
  %2987 = vmatpush1.bf16.msra.mxu0 %v2480
  %2988 = vmatprep.subr.bf16.mxu0 0
  %2989 = vmatpush1.bf16.msra.mxu0 %v2487
  %2990 = vmatprep.subr.bf16.mxu0 0
  %2991 = vmatpush1.bf16.msra.mxu0 %v2494
  %2992 = vmatprep.subr.bf16.mxu0 0
  %2993 = vmatpush1.bf16.msra.mxu0 %v2501
  %2994 = vmatprep.subr.bf16.mxu0 0
  %2995 = vmatpush1.bf16.msra.mxu0 %v2508
  %2996 = vmatprep.subr.bf16.mxu0 0
  %2997 = vmatpush1.bf16.msra.mxu0 %v2515
  %2998 = vmatprep.subr.bf16.mxu0 0
  %2999 = vmatpush1.bf16.msra.mxu0 %v2522
  %3000 = vmatprep.subr.bf16.mxu0 0
  %3001 = vmatpush1.bf16.msra.mxu0 %v2529
  %3002 = vmatprep.subr.bf16.mxu0 0
  %3003 = vmatpush1.bf16.msra.mxu0 %v2536
  %3004 = vmatprep.subr.bf16.mxu0 0
  %3005 = vmatpush1.bf16.msra.mxu0 %v2543
  %3006 = vmatprep.mubr.bf16.mxu0 %v1823
  %3007 = vmatmul.mubr.bf16.gmra.mrb[0].mxu0 %v1822
  %v3008 = vpop.f32.mrb[0].mxu0
  %v3009 = vadd.f32 %v2006, %v3008
  %v3010 = vpop.f32.mrb[0].mxu0
  %v3011 = vpop.f32.mrb[0].mxu0
  %v3012 = vadd.f32 %v2006, %v3011
  %v3013 = vpop.f32.mrb[0].mxu0
  %3014 = vdwg.mxu0
  %3015 = vmatprep.subr.bf16.mxu0 0
  %3016 = vmatpush1.bf16.msra.mxu0 %v2550
  %3017 = vmatprep.subr.bf16.mxu0 0
  %3018 = vmatpush1.bf16.msra.mxu0 %v2557
  %3019 = vmatprep.subr.bf16.mxu0 0
  %3020 = vmatpush1.bf16.msra.mxu0 %v2714
  %3021 = vmatprep.subr.bf16.mxu0 0
  %3022 = vmatpush1.bf16.msra.mxu0 0
  %3023 = vmatprep.subr.bf16.mxu0 0
  %3024 = vmatpush1.bf16.msra.mxu0 0
  %3025 = vmatprep.subr.bf16.mxu0 0
  %3026 = vmatpush1.bf16.msra.mxu0 0
  %3027 = vmatprep.subr.bf16.mxu0 0
  %3028 = vmatpush1.bf16.msra.mxu0 0
  %3029 = vmatprep.subr.bf16.mxu0 0
  %3030 = vmatpush1.bf16.msra.mxu0 0
  %3031 = vmatprep.subr.bf16.mxu0 0
  %3032 = vmatpush1.bf16.msra.mxu0 0
  %3033 = vmatprep.subr.bf16.mxu0 0
  %3034 = vmatpush1.bf16.msra.mxu0 0
  %3035 = vmatprep.subr.bf16.mxu0 0
  %3036 = vmatpush1.bf16.msra.mxu0 0
  %3037 = vmatprep.subr.bf16.mxu0 0
  %3038 = vmatpush1.bf16.msra.mxu0 0
  %3039 = vmatprep.subr.bf16.mxu0 0
  %3040 = vmatpush1.bf16.msra.mxu0 0
  %3041 = vmatprep.subr.bf16.mxu0 0
  %3042 = vmatpush1.bf16.msra.mxu0 0
  %3043 = vmatprep.subr.bf16.mxu0 0
  %3044 = vmatpush1.bf16.msra.mxu0 0
  %3045 = vmatprep.subr.bf16.mxu0 0
  %3046 = vmatpush1.bf16.msra.mxu0 0
  %3047 = vmatprep.mubr.bf16.mxu0 0
  %3048 = vmatmul.mubr.bf16.gmra.mrb[0].mxu0 %v2692
  %v3049 = vpop.f32.mrb[0].mxu0
  %v3050 = vadd.f32 %v3009, %v3049
  %v3051 = vpop.f32.mrb[0].mxu0
  %v3052 = vpop.f32.mrb[0].mxu0
  %v3053 = vadd.f32 %v3012, %v3052
  %v3054 = vpop.f32.mrb[0].mxu0
  %3055 = vdwg.mxu0
  %v3056 = vxor.u32 %v2794, 2147483648
  %v3057 = vxor.u32 %v2796, 2147483648
  %v3058 = vxor.u32 %v2880, 2147483648
  %v3059 = vxor.u32 %v2882, 2147483648
  %v3060 = vxor.u32 %v2966, 2147483648
  %v3061 = vxor.u32 %v2968, 2147483648
  %v3062 = vxor.u32 %v3050, 2147483648
  %v3063 = vxor.u32 %v2798, 2147483648
  %v3064 = vxor.u32 %v2800, 2147483648
  %v3065 = vxor.u32 %v2884, 2147483648
  %v3066 = vxor.u32 %v2886, 2147483648
  %v3067 = vxor.u32 %v2970, 2147483648
  %v3068 = vxor.u32 %v2972, 2147483648
  %v3069 = vxor.u32 %v3053, 2147483648
  %v3070 = vmul.f32 %v3056, 1.442695
  %v3071 = vpow.pop %v3070
  %v3072 = vmul.f32 %v3057, 1.442695
  %v3073 = vpow.pop %v3072
  %v3074 = vmul.f32 %v3058, 1.442695
  %v3075 = vpow.pop %v3074
  %v3076 = vmul.f32 %v3059, 1.442695
  %v3077 = vpow.pop %v3076
  %v3078 = vmul.f32 %v3060, 1.442695
  %v3079 = vpow.pop %v3078
  %v3080 = vmul.f32 %v3061, 1.442695
  %v3081 = vpow.pop %v3080
  %v3082 = vmul.f32 %v3062, 1.442695
  %v3083 = vpow.pop %v3082
  %v3084 = vmul.f32 %v3063, 1.442695
  %v3085 = vpow.pop %v3084
  %v3086 = vmul.f32 %v3064, 1.442695
  %v3087 = vpow.pop %v3086
  %v3088 = vmul.f32 %v3065, 1.442695
  %v3089 = vpow.pop %v3088
  %v3090 = vmul.f32 %v3066, 1.442695
  %v3091 = vpow.pop %v3090
  %v3092 = vmul.f32 %v3067, 1.442695
  %v3093 = vpow.pop %v3092
  %v3094 = vmul.f32 %v3068, 1.442695
  %v3095 = vpow.pop %v3094
  %v3096 = vmul.f32 %v3069, 1.442695
  %v3097 = vpow.pop %v3096
  %v3098 = vadd.f32 %v3071, 1.0
  %v3099 = vadd.f32 %v3073, 1.0
  %v3100 = vadd.f32 %v3075, 1.0
  %v3101 = vadd.f32 %v3077, 1.0
  %v3102 = vadd.f32 %v3079, 1.0
  %v3103 = vadd.f32 %v3081, 1.0
  %v3104 = vadd.f32 %v3083, 1.0
  %v3105 = vadd.f32 %v3085, 1.0
  %v3106 = vadd.f32 %v3087, 1.0
  %v3107 = vadd.f32 %v3089, 1.0
  %v3108 = vadd.f32 %v3091, 1.0
  %v3109 = vadd.f32 %v3093, 1.0
  %v3110 = vadd.f32 %v3095, 1.0
  %v3111 = vadd.f32 %v3097, 1.0
  %v3112 = vrcp.pop %v3098
  %v3113 = vmul.f32 1.0, %v3112
  %v3114 = vrcp.pop %v3099
  %v3115 = vmul.f32 1.0, %v3114
  %v3116 = vrcp.pop %v3100
  %v3117 = vmul.f32 1.0, %v3116
  %v3118 = vrcp.pop %v3101
  %v3119 = vmul.f32 1.0, %v3118
  %v3120 = vrcp.pop %v3102
  %v3121 = vmul.f32 1.0, %v3120
  %v3122 = vrcp.pop %v3103
  %v3123 = vmul.f32 1.0, %v3122
  %v3124 = vrcp.pop %v3104
  %v3125 = vmul.f32 1.0, %v3124
  %v3126 = vrcp.pop %v3105
  %v3127 = vmul.f32 1.0, %v3126
  %v3128 = vrcp.pop %v3106
  %v3129 = vmul.f32 1.0, %v3128
  %v3130 = vrcp.pop %v3107
  %v3131 = vmul.f32 1.0, %v3130
  %v3132 = vrcp.pop %v3108
  %v3133 = vmul.f32 1.0, %v3132
  %v3134 = vrcp.pop %v3109
  %v3135 = vmul.f32 1.0, %v3134
  %v3136 = vrcp.pop %v3110
  %v3137 = vmul.f32 1.0, %v3136
  %v3138 = vrcp.pop %v3111
  %v3139 = vmul.f32 1.0, %v3138
  %v3140 = vpack.c.bf16 %v3127, %v3113
  %v3141 = vpack.c.bf16 %v3129, %v3115
  %v3142 = vpack.c.bf16 %v3131, %v3117
  %v3143 = vpack.c.bf16 %v3133, %v3119
  %v3144 = vpack.c.bf16 %v3135, %v3121
  %v3145 = vpack.c.bf16 %v3137, %v3123
  %v3146 = vpack.c.bf16 %v3139, %v3125
  %v3154 = vunpack.c.l.b16 %v3140
  %v3155 = vunpack.c.l.b16 %v3141
  %v3156 = vunpack.c.l.b16 %v3142
  %v3157 = vunpack.c.l.b16 %v3143
  %v3158 = vunpack.c.l.b16 %v3144
  %v3159 = vunpack.c.l.b16 %v3145
  %v3160 = vunpack.c.l.b16 %v3146
  %v3161 = vunpack.c.h.b16 %v3140
  %v3162 = vunpack.c.h.b16 %v3141
  %v3163 = vunpack.c.h.b16 %v3142
  %v3164 = vunpack.c.h.b16 %v3143
  %v3165 = vunpack.c.h.b16 %v3144
  %v3166 = vunpack.c.h.b16 %v3145
  %v3167 = vunpack.c.h.b16 %v3146
  %v3168 = vpack.c.b16 %v3155, %v3154
  %v3169 = vpack.c.b16 %v3157, %v3156
  %v3170 = vpack.c.b16 %v3159, %v3158
  %v3171 = vpack.c.b16 %v3160, %v3160
  %v3172 = vpack.c.b16 %v3162, %v3161
  %v3173 = vpack.c.b16 %v3164, %v3163
  %v3174 = vpack.c.b16 %v3166, %v3165
  %v3175 = vpack.c.b16 %v3167, %v3167
  %3184 = vst [vmem:[%s10] sm:$0xff] %v3168
  %3185 = vst [vmem:[%s10 + $0x8] sm:$0xff] %v3169
  %3186 = vst [vmem:[%s10 + $0x10] sm:$0xff] %v3170
  %vm3187 = vcmask 125952
  %3188 = vst.msk [vmem:[%s10 + $0x18] sm:$0xf] %vm3187, %v3171
  %3189 = vst [vmem:[%s10 + $0x1c] sm:$0xff] %v3172
  %3190 = vst [vmem:[%s10 + $0x24] sm:$0xff] %v3173
  %3191 = vst [vmem:[%s10 + $0x2c] sm:$0xff] %v3174
  %3192 = vst.msk [vmem:[%s10 + $0x34] sm:$0xf] %vm3187, %v3175
  %3193 = vst [vmem:[%s11] sm:$0xff] %v1648
  %3194 = vst [vmem:[%s11 + $0x8] sm:$0xff] %v1650
  %3195 = vst [vmem:[%s11 + $0x10] sm:$0xff] %v1654
  %3196 = vst [vmem:[%s11 + $0x18] sm:$0xff] %v1656
  // Predicated region
  $region42: #{vae_forward.1} parent=0 // pred_check
    _
  $region43: #{vae_forward.1} parent=0 // pred_check_branch
    %3198 = sbr.rel (0) target = $region45
  $region44: #{vae_forward.1} parent=0 // pred_region
    _
  $region45: #{vae_forward.1} parent=0 // pred_fallthru
    _
  // Predicated region
  $region46: #{vae_forward.1} parent=0 // pred_check
    _
  $region47: #{vae_forward.1} parent=0 // pred_check_branch
    %3200 = sbr.rel (0) target = $region49
  $region48: #{vae_forward.1} parent=0 // pred_region
    _
  $region49: #{vae_forward.1} parent=0 // pred_fallthru
    _
  // Predicated region
  $region50: #{vae_forward.1} parent=0 // pred_check
    _
  $region51: #{vae_forward.1} parent=0 // pred_check_branch
    %3202 = sbr.rel (0) target = $region53
  $region52: #{vae_forward.1} parent=0 // pred_region
    _
  $region53: #{vae_forward.1} parent=0 // pred_fallthru
    _
  // Predicated region
  $region54: #{vae_forward.1} parent=0 // pred_check
    _
  $region55: #{vae_forward.1} parent=0 // pred_check_branch
    %3204 = sbr.rel (0) target = $region57
  $region56: #{vae_forward.1} parent=0 // pred_region
    _
  $region57: #{vae_forward.1} parent=0 // pred_fallthru
    _

</llo_original>
